<compile_context>
chip_gen: v7x
topology: tpu7x:2x2x1
jax: 0.10.0
libtpu: 0.0.40
codegen_flags: <defaults>
</compile_context>

<pallas_src>
import jax
import jax.numpy as jnp
from jax.experimental import pallas as pl
from jax.experimental.pallas import tpu as pltpu


def _round_up(v, m):
    return (v + m - 1) // m * m


def _choose_bt(B, N, C, block_b):
    """Pick the batch-tile size.

    Large enough to amortize the ~0.35us per-grid-step overhead, small enough
    that the per-step footprint (bf16 x double-buffer + f32 temporaries) stays
    within a budget that leaves headroom under v7x's 64 MiB VMEM, and giving
    >=2 grid steps when possible so the 'parallel' batch axis shards across
    v7x's two TensorCores (no-op on single-TC v5e/v6e).
    """
    bytes_per_row = (2 * N * C * 2 + 2 * C * 2          # x, x0 blocks (bf16, 2 buffers)
                     + N * 2 * C * 4 + N * C * 4        # kv, attn_full temps (f32)
                     + 8 * C * 4)                       # q/ctx/y/misc temps (f32)
    vmem_budget = 40 << 20
    bt_cap = max(8, (vmem_budget // bytes_per_row) // 8 * 8)
    bt = max(8, min(block_b, bt_cap))
    if B <= 8:
        return B                                        # tiny batch: single step
    # Prefer >=2 grid steps (megacore sharding) once B is big enough to split.
    bt = min(bt, _round_up(_round_up(B, 2) // 2, 8))
    return max(8, min(bt, _round_up(B, 8)))


def _cross_attn_kernel(bt, n, c, h):
    def kernel(x_ref, x0_ref, wq_ref, wkv_ref, wp_ref, bp_ref, seg_ref,
               segt_ref, o_ref):
        x_flat = x_ref[...]                                       # (bt*n, c) bf16
        x0 = x0_ref[...]                                          # (bt, c)   bf16

        # K/V projection over all bt*n rows, Q only over the bt token-0 rows.
        kv = jnp.dot(x_flat, wkv_ref[...],
                     preferred_element_type=jnp.float32)          # (bt*n, 2c) f32
        q = jnp.dot(x0, wq_ref[...],
                    preferred_element_type=jnp.float32)           # (bt, c) f32; scale pre-folded

        kv3 = kv.reshape(bt, n, 2 * c)                            # n==8: sublane group split
        k = kv3[:, :, 0:c]                                        # (bt, n, c)
        v = kv3[:, :, c:2 * c]                                    # (bt, n, c)

        # Per-head logits via segment-sum matmul: (k*q) @ Seg -> (bt, n, h).
        s = (k * q.reshape(bt, 1, c)).reshape(bt * n, c).astype(jnp.bfloat16)
        logits = jnp.dot(s, seg_ref[...],
                         preferred_element_type=jnp.float32).reshape(bt, n, h)

        # Softmax over the key axis (N), kept in f32.
        m = jnp.max(logits, axis=1, keepdims=True)
        p = jnp.exp(logits - m)
        denom = jnp.sum(p, axis=1, keepdims=True)
        p = p * pl.reciprocal(denom, approx=True)

        # Expand per-head weights back to channel layout and contract with V.
        attn_full = jnp.dot(p.reshape(bt * n, h).astype(jnp.bfloat16),
                            segt_ref[...],
                            preferred_element_type=jnp.float32).reshape(bt, n, c)
        ctx = jnp.sum(attn_full * v, axis=1)                      # (bt, c) f32

        # Output projection (with bias), batched over bt rows.
        y = jnp.dot(ctx.astype(jnp.bfloat16), wp_ref[...],
                    preferred_element_type=jnp.float32) + bp_ref[...]
        # TODO(synk): lane-dense output repack (pack 4 batch rows into one
        # 128-lane row) to avoid 32-lane masked stores; needs a safe in-kernel
        # sublane->lane reshape.
        o_ref[...] = y.astype(o_ref.dtype)

    return kernel


def cross_attention_pallas(x, wq, wk, wv, wp, bp, num_heads, block_b=2048):
    """x: (B, N, C). Weights are PyTorch-convention (out, in); bp: (C,)."""
    B, N, C = x.shape
    H = num_heads
    Dh = C // H
    scale = Dh ** -0.5
    out_dtype = x.dtype

    BT = _choose_bt(B, N, C, block_b)
    B_pad = pl.cdiv(B, BT) * BT
    if B_pad != B:
        x = jnp.pad(x, ((0, B_pad - B), (0, 0), (0, 0)))

    cdt = jnp.bfloat16
    x_flat = x.reshape(B_pad * N, C).astype(cdt)                  # (B_pad*N, C)
    x0 = x[:, 0, :].astype(cdt)                                   # (B_pad, C) token-0 rows

    # Softmax scale folded into Wq^T; K/V fused into one (C, 2C) weight.
    wq_t = (wq.T * scale).astype(cdt)                             # (C, C)
    wkv = jnp.concatenate([wk.T, wv.T], axis=1).astype(cdt)       # (C, 2C)
    wp_t = wp.T.astype(cdt)                                       # (C, C)
    bp2d = bp.reshape(1, C).astype(jnp.float32)

    # Segment indicator: seg[c, h] = 1 iff channel c belongs to head h.
    seg = (jnp.arange(C)[:, None] // Dh == jnp.arange(H)[None, :]).astype(cdt)
    seg_t = seg.T                                                 # (H, C)

    flops = (2 * B_pad * N * C * 2 * C        # fused K/V projection
             + 2 * B_pad * C * C              # Q projection (token 0 only)
             + 4 * B_pad * N * C * H          # seg / seg^T matmuls
             + 2 * B_pad * C * C)             # output projection
    bytes_accessed = (2 * (B_pad * N * C + B_pad * C)             # bf16 x, x0
                      + 2 * (C * 2 * C + 2 * C * C + 2 * C * H)   # bf16 weights + seg
                      + 4 * C                                      # f32 bias
                      + 4 * B_pad * C)                             # f32 output
    cost = pl.CostEstimate(flops=flops,
                           transcendentals=B_pad * N * H,
                           bytes_accessed=bytes_accessed)

    grid_spec = pltpu.PrefetchScalarGridSpec(
        num_scalar_prefetch=0,
        grid=(B_pad // BT,),
        in_specs=[
            pl.BlockSpec((BT * N, C), lambda b: (b, 0)),   # x, BT batch rows flattened
            pl.BlockSpec((BT, C), lambda b: (b, 0)),       # token-0 rows
            pl.BlockSpec((C, C), lambda b: (0, 0)),        # Wq^T * scale
            pl.BlockSpec((C, 2 * C), lambda b: (0, 0)),    # [Wk^T | Wv^T]
            pl.BlockSpec((C, C), lambda b: (0, 0)),        # Wproj^T
            pl.BlockSpec((1, C), lambda b: (0, 0)),        # proj bias
            pl.BlockSpec((C, H), lambda b: (0, 0)),        # seg
            pl.BlockSpec((H, C), lambda b: (0, 0)),        # seg^T
        ],
        out_specs=pl.BlockSpec((BT, C), lambda b: (b, 0)),
    )

    out = pl.pallas_call(
        _cross_attn_kernel(BT, N, C, H),
        out_shape=jax.ShapeDtypeStruct((B_pad, C), out_dtype),
        grid_spec=grid_spec,
        compiler_params=pltpu.CompilerParams(
            dimension_semantics=("parallel",),
            vmem_limit_bytes=48 << 20),
        cost_estimate=cost,
    )(x_flat, x0, wq_t, wkv, wp_t, bp2d, seg, seg_t)

    return out[:B].reshape(B, 1, C)


def cross_attention_ref(x, wq, wk, wv, wp, bp, num_heads):
    """Pure-JAX f32 reference mirroring the PyTorch forward."""
    B, N, C = x.shape
    H = num_heads
    Dh = C // H
    scale = Dh ** -0.5
    q = (x[:, 0:1, :] @ wq.T).reshape(B, 1, H, Dh).transpose(0, 2, 1, 3)  # (B,H,1,Dh)
    k = (x @ wk.T).reshape(B, N, H, Dh).transpose(0, 2, 1, 3)             # (B,H,N,Dh)
    v = (x @ wv.T).reshape(B, N, H, Dh).transpose(0, 2, 1, 3)             # (B,H,N,Dh)
    attn = (q @ k.transpose(0, 1, 3, 2)) * scale                          # (B,H,1,N)
    attn = jax.nn.softmax(attn, axis=-1)
    out = (attn @ v).transpose(0, 2, 1, 3).reshape(B, 1, C)               # (B,1,C)
    return out @ wp.T + bp


if __name__ == "__main__":
    B, N, C = 20, 8, 32
    num_heads = 8

    key = jax.random.PRNGKey(0)
    kx, kq, kk, kv, kp, kb = jax.random.split(key, 6)

    bound = 1.0 / (C ** 0.5)  # PyTorch Linear default init range
    x = jax.random.normal(kx, (B, N, C), dtype=jnp.float32)
    wq = jax.random.uniform(kq, (C, C), jnp.float32, -bound, bound)  # (out, in), no bias
    wk = jax.random.uniform(kk, (C, C), jnp.float32, -bound, bound)
    wv = jax.random.uniform(kv, (C, C), jnp.float32, -bound, bound)
    wp = jax.random.uniform(kp, (C, C), jnp.float32, -bound, bound)
    bp = jax.random.uniform(kb, (C,), jnp.float32, -bound, bound)

    ref = cross_attention_ref(x, wq, wk, wv, wp, bp, num_heads)

    # bf16 MXU inputs -> tolerances appropriate for bfloat16 (~3e-3 relative).
    tol = dict(atol=2e-2, rtol=2e-2)

    # Default tiling (BT=16 here -> padded to 24/32, 2 grid steps).
    out1 = jax.block_until_ready(
        cross_attention_pallas(x, wq, wk, wv, wp, bp, num_heads))
    assert out1.shape == (B, 1, C)
    assert jnp.allclose(out1, ref, **tol), "mismatch (default BT)"

    # Small tile / multi-step grid with batch padding (BT=8 -> B 20 -> 24, 3 steps).
    out2 = jax.block_until_ready(
        cross_attention_pallas(x, wq, wk, wv, wp, bp, num_heads, block_b=8))
    assert out2.shape == (B, 1, C)
    assert jnp.allclose(out2, ref, **tol), "mismatch (BT=8, padded)"

    print("KERNEL_OK")
</pallas_src>

<mosaic_0001>
module attributes {stable_mosaic.version = 11 : i64} {
  func.func @kernel(%arg0: i32, %arg1: memref<128x32xbf16, #tpu.memory_space<vmem>>, %arg2: memref<16x32xbf16, #tpu.memory_space<vmem>>, %arg3: memref<32x32xbf16, #tpu.memory_space<vmem>>, %arg4: memref<32x64xbf16, #tpu.memory_space<vmem>>, %arg5: memref<32x32xbf16, #tpu.memory_space<vmem>>, %arg6: memref<1x32xf32, #tpu.memory_space<vmem>>, %arg7: memref<32x8xbf16, #tpu.memory_space<vmem>>, %arg8: memref<8x32xbf16, #tpu.memory_space<vmem>>, %arg9: memref<16x32xf32, #tpu.memory_space<vmem>>) attributes {dimension_semantics = [#tpu.dimension_semantics<parallel>], iteration_bounds = array<i64: 2>, scalar_prefetch = 0 : i64, scratch_operands = 0 : i64, tpu.core_type = #tpu.core_type<tc>, window_params = [{transform_indices = @transform_0, window_bounds = array<i64: 128, 32>}, {transform_indices = @transform_1, window_bounds = array<i64: 16, 32>}, {pipeline_mode = #tpu.pipeline_mode<synchronous>, transform_indices = @transform_2, window_bounds = array<i64: 32, 32>}, {pipeline_mode = #tpu.pipeline_mode<synchronous>, transform_indices = @transform_3, window_bounds = array<i64: 32, 64>}, {pipeline_mode = #tpu.pipeline_mode<synchronous>, transform_indices = @transform_4, window_bounds = array<i64: 32, 32>}, {pipeline_mode = #tpu.pipeline_mode<synchronous>, transform_indices = @transform_5, window_bounds = array<i64: 1, 32>}, {pipeline_mode = #tpu.pipeline_mode<synchronous>, transform_indices = @transform_6, window_bounds = array<i64: 32, 8>}, {pipeline_mode = #tpu.pipeline_mode<synchronous>, transform_indices = @transform_7, window_bounds = array<i64: 8, 32>}, {transform_indices = @transform_8, window_bounds = array<i64: 16, 32>}]} {
    %c0 = arith.constant 0 : index
    %c0_0 = arith.constant 0 : index
    %0 = vector.load %arg1[%c0, %c0_0] : memref<128x32xbf16, #tpu.memory_space<vmem>>, vector<128x32xbf16>
    %c0_1 = arith.constant 0 : index
    %c0_2 = arith.constant 0 : index
    %1 = vector.load %arg2[%c0_1, %c0_2] : memref<16x32xbf16, #tpu.memory_space<vmem>>, vector<16x32xbf16>
    %c0_3 = arith.constant 0 : index
    %c0_4 = arith.constant 0 : index
    %2 = vector.load %arg4[%c0_3, %c0_4] : memref<32x64xbf16, #tpu.memory_space<vmem>>, vector<32x64xbf16>
    %cst = arith.constant dense<0.000000e+00> : vector<128x64xf32>
    %3 = tpu.matmul %0, %2, %cst {dimension_numbers = #tpu.dot_dimension_numbers<[1], [0], [0], [1], [0, 0, 1, 1], [], []>} : vector<128x32xbf16>, vector<32x64xbf16>, vector<128x64xf32> -> vector<128x64xf32>
    %c0_5 = arith.constant 0 : index
    %c0_6 = arith.constant 0 : index
    %4 = vector.load %arg3[%c0_5, %c0_6] : memref<32x32xbf16, #tpu.memory_space<vmem>>, vector<32x32xbf16>
    %cst_7 = arith.constant dense<0.000000e+00> : vector<16x32xf32>
    %5 = tpu.matmul %1, %4, %cst_7 {dimension_numbers = #tpu.dot_dimension_numbers<[1], [0], [0], [1], [0, 0, 1, 1], [], []>} : vector<16x32xbf16>, vector<32x32xbf16>, vector<16x32xf32> -> vector<16x32xf32>
    %6 = vector.shape_cast %3 : vector<128x64xf32> to vector<16x8x64xf32>
    %7 = vector.extract_strided_slice %6 {offsets = [0, 0, 0], sizes = [16, 8, 32], strides = [1, 1, 1]} : vector<16x8x64xf32> to vector<16x8x32xf32>
    %8 = vector.extract_strided_slice %6 {offsets = [0, 0, 32], sizes = [16, 8, 32], strides = [1, 1, 1]} : vector<16x8x64xf32> to vector<16x8x32xf32>
    %9 = vector.shape_cast %5 : vector<16x32xf32> to vector<16x1x32xf32>
    %10 = vector.broadcast %9 : vector<16x1x32xf32> to vector<16x8x32xf32>
    %11 = arith.mulf %7, %10 : vector<16x8x32xf32>
    %12 = vector.shape_cast %11 : vector<16x8x32xf32> to vector<128x32xf32>
    %13 = arith.truncf %12 : vector<128x32xf32> to vector<128x32xbf16>
    %c0_8 = arith.constant 0 : index
    %c0_9 = arith.constant 0 : index
    %14 = vector.load %arg7[%c0_8, %c0_9] : memref<32x8xbf16, #tpu.memory_space<vmem>>, vector<32x8xbf16>
    %cst_10 = arith.constant dense<0.000000e+00> : vector<128x8xf32>
    %15 = tpu.matmul %13, %14, %cst_10 {dimension_numbers = #tpu.dot_dimension_numbers<[1], [0], [0], [1], [0, 0, 1, 1], [], []>} : vector<128x32xbf16>, vector<32x8xbf16>, vector<128x8xf32> -> vector<128x8xf32>
    %16 = vector.shape_cast %15 : vector<128x8xf32> to vector<16x8x8xf32>
    %cst_11 = arith.constant dense<0xFF800000> : vector<16x8xf32>
    %17 = vector.multi_reduction <maximumf>, %16, %cst_11 [1] : vector<16x8x8xf32> to vector<16x8xf32>
    %18 = vector.shape_cast %17 : vector<16x8xf32> to vector<16x1x8xf32>
    %19 = vector.broadcast %18 : vector<16x1x8xf32> to vector<16x8x8xf32>
    %20 = arith.subf %16, %19 : vector<16x8x8xf32>
    %21 = math.exp %20 : vector<16x8x8xf32>
    %cst_12 = arith.constant dense<0.000000e+00> : vector<16x8xf32>
    %22 = vector.multi_reduction <add>, %21, %cst_12 [1] : vector<16x8x8xf32> to vector<16x8xf32>
    %23 = vector.shape_cast %22 : vector<16x8xf32> to vector<16x1x8xf32>
    %24 = tpu.reciprocal %23 {approx = true} : vector<16x1x8xf32> -> vector<16x1x8xf32>
    %25 = vector.broadcast %24 : vector<16x1x8xf32> to vector<16x8x8xf32>
    %26 = arith.mulf %21, %25 : vector<16x8x8xf32>
    %27 = vector.shape_cast %26 : vector<16x8x8xf32> to vector<128x8xf32>
    %28 = arith.truncf %27 : vector<128x8xf32> to vector<128x8xbf16>
    %c0_13 = arith.constant 0 : index
    %c0_14 = arith.constant 0 : index
    %29 = vector.load %arg8[%c0_13, %c0_14] : memref<8x32xbf16, #tpu.memory_space<vmem>>, vector<8x32xbf16>
    %cst_15 = arith.constant dense<0.000000e+00> : vector<128x32xf32>
    %30 = tpu.matmul %28, %29, %cst_15 {dimension_numbers = #tpu.dot_dimension_numbers<[1], [0], [0], [1], [0, 0, 1, 1], [], []>} : vector<128x8xbf16>, vector<8x32xbf16>, vector<128x32xf32> -> vector<128x32xf32>
    %31 = vector.shape_cast %30 : vector<128x32xf32> to vector<16x8x32xf32>
    %32 = arith.mulf %31, %8 : vector<16x8x32xf32>
    %cst_16 = arith.constant dense<0.000000e+00> : vector<16x32xf32>
    %33 = vector.multi_reduction <add>, %32, %cst_16 [1] : vector<16x8x32xf32> to vector<16x32xf32>
    %34 = arith.truncf %33 : vector<16x32xf32> to vector<16x32xbf16>
    %c0_17 = arith.constant 0 : index
    %c0_18 = arith.constant 0 : index
    %35 = vector.load %arg5[%c0_17, %c0_18] : memref<32x32xbf16, #tpu.memory_space<vmem>>, vector<32x32xbf16>
    %cst_19 = arith.constant dense<0.000000e+00> : vector<16x32xf32>
    %36 = tpu.matmul %34, %35, %cst_19 {dimension_numbers = #tpu.dot_dimension_numbers<[1], [0], [0], [1], [0, 0, 1, 1], [], []>} : vector<16x32xbf16>, vector<32x32xbf16>, vector<16x32xf32> -> vector<16x32xf32>
    %c0_20 = arith.constant 0 : index
    %c0_21 = arith.constant 0 : index
    %37 = vector.load %arg6[%c0_20, %c0_21] : memref<1x32xf32, #tpu.memory_space<vmem>>, vector<1x32xf32>
    %38 = vector.broadcast %37 : vector<1x32xf32> to vector<16x32xf32>
    %39 = arith.addf %36, %38 : vector<16x32xf32>
    %c0_22 = arith.constant 0 : index
    %c0_23 = arith.constant 0 : index
    %40 = vector.load %arg9[%c0_22, %c0_23] : memref<16x32xf32, #tpu.memory_space<vmem>>, vector<16x32xf32>
    tpu.vector_store %arg9[%c0_22, %c0_23], %39 {strides = array<i32>} : memref<16x32xf32, #tpu.memory_space<vmem>>, vector<16x32xf32>,
    return
  }
  func.func @transform_0(%arg0: i32) -> (i32, i32) {
    %c0_i32 = arith.constant 0 : i32
    %c0_i32_0 = arith.constant 0 : i32
    return %arg0, %c0_i32 : i32, i32
  }
  func.func @transform_1(%arg0: i32) -> (i32, i32) {
    %c0_i32 = arith.constant 0 : i32
    %c0_i32_0 = arith.constant 0 : i32
    return %arg0, %c0_i32 : i32, i32
  }
  func.func @transform_2(%arg0: i32) -> (i32, i32) {
    %c0_i32 = arith.constant 0 : i32
    %c0_i32_0 = arith.constant 0 : i32
    %c0_i32_1 = arith.constant 0 : i32
    return %c0_i32, %c0_i32_0 : i32, i32
  }
  func.func @transform_3(%arg0: i32) -> (i32, i32) {
    %c0_i32 = arith.constant 0 : i32
    %c0_i32_0 = arith.constant 0 : i32
    %c0_i32_1 = arith.constant 0 : i32
    return %c0_i32, %c0_i32_0 : i32, i32
  }
  func.func @transform_4(%arg0: i32) -> (i32, i32) {
    %c0_i32 = arith.constant 0 : i32
    %c0_i32_0 = arith.constant 0 : i32
    %c0_i32_1 = arith.constant 0 : i32
    return %c0_i32, %c0_i32_0 : i32, i32
  }
  func.func @transform_5(%arg0: i32) -> (i32, i32) {
    %c0_i32 = arith.constant 0 : i32
    %c0_i32_0 = arith.constant 0 : i32
    %c0_i32_1 = arith.constant 0 : i32
    return %c0_i32, %c0_i32_0 : i32, i32
  }
  func.func @transform_6(%arg0: i32) -> (i32, i32) {
    %c0_i32 = arith.constant 0 : i32
    %c0_i32_0 = arith.constant 0 : i32
    %c0_i32_1 = arith.constant 0 : i32
    return %c0_i32, %c0_i32_0 : i32, i32
  }
  func.func @transform_7(%arg0: i32) -> (i32, i32) {
    %c0_i32 = arith.constant 0 : i32
    %c0_i32_0 = arith.constant 0 : i32
    %c0_i32_1 = arith.constant 0 : i32
    return %c0_i32, %c0_i32_0 : i32, i32
  }
  func.func @transform_8(%arg0: i32) -> (i32, i32) {
    %c0_i32 = arith.constant 0 : i32
    %c0_i32_0 = arith.constant 0 : i32
    return %arg0, %c0_i32 : i32, i32
  }
}

</mosaic_0001>

<llo_original>
// kernel: tpu_custom_call.1
$region0: #{tpu_custom_call.1}
  #allocation0 [shape = 'u32[]', space=smem, size = 0x4, offset = 0x4, fixed_abs, tag = 'smem constant byte address 0x4 - core index']
  #allocation1 [shape = 'u32[144,128]{1,0:T(1,128)}', space=vmem, size = 0x12000, scoped, tag = 'internal scratch']
  %s0 = inlined_call_operand.vmem [shape: bf16[256,32], index: 0, kind: input, shape index: {}]
  %s1 = inlined_call_operand.vmem [shape: bf16[32,32], index: 1, kind: input, shape index: {}]
  %s2 = inlined_call_operand.vmem [shape: bf16[32,32], index: 2, kind: input, shape index: {}]
  %s3 = inlined_call_operand.vmem [shape: bf16[32,64], index: 3, kind: input, shape index: {}]
  %s4 = inlined_call_operand.vmem [shape: bf16[32,32], index: 4, kind: input, shape index: {}]
  %s5 = inlined_call_operand.vmem [shape: f32[1,32], index: 5, kind: input, shape index: {}]
  %s6 = inlined_call_operand.vmem [shape: bf16[32,8], index: 6, kind: input, shape index: {}]
  %s7 = inlined_call_operand.vmem [shape: bf16[8,32], index: 7, kind: input, shape index: {}]
  %s8 = inlined_call_operand.hbm [shape: f32[32,32], index: 8, kind: output, shape index: {}]
  %s9 = sld [smem:[#allocation0]]
  $region65: #{tpu_custom_call.1} parent=0
    _
  %s11 = ssub.s32 1, %s9
  %s12 = scalar_select 0, %s11, %s9
  $region1: #{tpu_custom_call.1} parent=0
    #allocation2 [shape = 'u8[16384]{0}', space=vmem, size = 0x4000, scoped, tag = 'output window, operand 0']
    #allocation3 [shape = 's32[2]{0}', space=sflag, size = 0x8, scoped, tag = 'scoped memory for tpu_custom_call.1']
    %13 = vsyncpa [#allocation3], 0
    %s14 = scalar_lea.sflag [#allocation3], 1
    %15 = vsyncpa %s14, 0
    loop: start=0, step=1, limit=4
    $region2: #{tpu_custom_call.1} parent=1 // loop_pre_header
      _
    $region3: #{tpu_custom_call.1} parent=1 // loop_header
      %s17 = sphi 0, %s21
      %p18 = scmp.ge.s32.totalorder %s17, 4
      %s27 = sphi 0, %s29
      %s30 = sphi 0, %s27
      %s31 = sphi 0, %s30
      %s47 = sphi 0, %s31
      %s53 = sphi 0, %s55
      %s56 = sphi 0, %s53
      %s57 = sphi 0, %s56
      %s73 = sphi 0, %s57
      %s77 = sphi 0, %s77
      %s79 = sphi 0, %s77
      %s80 = sphi 0, %s79
      %s94 = sphi 0, %s80
      %s98 = sphi 0, %s98
      %s100 = sphi 0, %s98
      %s101 = sphi 0, %s100
      %s115 = sphi 0, %s101
      %s119 = sphi 0, %s119
      %s121 = sphi 0, %s119
      %s122 = sphi 0, %s121
      %s136 = sphi 0, %s122
      %s140 = sphi 0, %s140
      %s142 = sphi 0, %s140
      %s143 = sphi 0, %s142
      %s157 = sphi 0, %s143
      %s161 = sphi 0, %s161
      %s163 = sphi 0, %s161
      %s164 = sphi 0, %s163
      %s178 = sphi 0, %s164
      %s182 = sphi 0, %s182
      %s184 = sphi 0, %s182
      %s185 = sphi 0, %s184
      %s199 = sphi 0, %s185
      %s205 = sphi 0, %s207
      %s208 = sphi 0, %s205
      %s209 = sphi 0, %s208
      %s225 = sphi 0, %s209
    $region4: #{tpu_custom_call.1} parent=1 // loop_header_branch
      %20 = sbr.rel (%p18) target = $region8
    $region5: #{tpu_custom_call.1} parent=1 // loop_body
      %s22 = ssub.s32 %s17, 1
      %s23 = ssub.s32 %s17, 2
      %s24 = sadd.s32 %s17, 1
      %s25 = ssub.s32 %s17, %s24
      %p26 = scmp.eq.s32.totalorder %s25, 0
      %s28 = sadd.s32 %s27, 1
      %s29 = scalar_select %p26, %s27, %s28
      %p32 = pneg %p26
      %p33 = scmp.eq.s32.totalorder %s17, 1
      %p34 = por %p32, %p33
      %p35 = scmp.ne.s32.totalorder %s27, %s30
      %p36 = scmp.eq.s32.totalorder %s17, 0
      %p37 = por %p35, %p36
      %p38 = scmp.ne.s32.totalorder %s27, %s30
      %p39 = scmp.eq.s32.totalorder %s22, 1
      %p40 = por %p38, %p39
      %p41 = scmp.ne.s32.totalorder %s30, %s31
      %p42 = scmp.eq.s32.totalorder %s22, 0
      %p43 = por %p41, %p42
      %p44 = scmp.ne.s32.totalorder %s30, %s31
      %p45 = scmp.eq.s32.totalorder %s23, 1
      %p46 = por %p44, %p45
      %p48 = scmp.ne.s32.totalorder %s31, %s47
      %p49 = scmp.eq.s32.totalorder %s23, 0
      %p50 = por %p48, %p49
      %s51 = ssub.s32 %s17, %s24
      %p52 = scmp.eq.s32.totalorder %s51, 0
      %s54 = sadd.s32 %s53, 1
      %s55 = scalar_select %p52, %s53, %s54
      %p58 = pneg %p52
      %p59 = scmp.eq.s32.totalorder %s17, 1
      %p60 = por %p58, %p59
      %p61 = scmp.ne.s32.totalorder %s53, %s56
      %p62 = scmp.eq.s32.totalorder %s17, 0
      %p63 = por %p61, %p62
      %p64 = scmp.ne.s32.totalorder %s53, %s56
      %p65 = scmp.eq.s32.totalorder %s22, 1
      %p66 = por %p64, %p65
      %p67 = scmp.ne.s32.totalorder %s56, %s57
      %p68 = scmp.eq.s32.totalorder %s22, 0
      %p69 = por %p67, %p68
      %p70 = scmp.ne.s32.totalorder %s56, %s57
      %p71 = scmp.eq.s32.totalorder %s23, 1
      %p72 = por %p70, %p71
      %p74 = scmp.ne.s32.totalorder %s57, %s73
      %p75 = scmp.eq.s32.totalorder %s23, 0
      %p76 = por %p74, %p75
      %s78 = sadd.s32 %s77, 1
      %p81 = scmp.eq.s32.totalorder %s17, 1
      %p82 = scmp.ne.s32.totalorder %s77, %s79
      %p83 = scmp.eq.s32.totalorder %s17, 0
      %p84 = por %p82, %p83
      %p85 = scmp.ne.s32.totalorder %s77, %s79
      %p86 = scmp.eq.s32.totalorder %s22, 1
      %p87 = por %p85, %p86
      %p88 = scmp.ne.s32.totalorder %s79, %s80
      %p89 = scmp.eq.s32.totalorder %s22, 0
      %p90 = por %p88, %p89
      %p91 = scmp.ne.s32.totalorder %s79, %s80
      %p92 = scmp.eq.s32.totalorder %s23, 1
      %p93 = por %p91, %p92
      %p95 = scmp.ne.s32.totalorder %s80, %s94
      %p96 = scmp.eq.s32.totalorder %s23, 0
      %p97 = por %p95, %p96
      %s99 = sadd.s32 %s98, 1
      %p102 = scmp.eq.s32.totalorder %s17, 1
      %p103 = scmp.ne.s32.totalorder %s98, %s100
      %p104 = scmp.eq.s32.totalorder %s17, 0
      %p105 = por %p103, %p104
      %p106 = scmp.ne.s32.totalorder %s98, %s100
      %p107 = scmp.eq.s32.totalorder %s22, 1
      %p108 = por %p106, %p107
      %p109 = scmp.ne.s32.totalorder %s100, %s101
      %p110 = scmp.eq.s32.totalorder %s22, 0
      %p111 = por %p109, %p110
      %p112 = scmp.ne.s32.totalorder %s100, %s101
      %p113 = scmp.eq.s32.totalorder %s23, 1
      %p114 = por %p112, %p113
      %p116 = scmp.ne.s32.totalorder %s101, %s115
      %p117 = scmp.eq.s32.totalorder %s23, 0
      %p118 = por %p116, %p117
      %s120 = sadd.s32 %s119, 1
      %p123 = scmp.eq.s32.totalorder %s17, 1
      %p124 = scmp.ne.s32.totalorder %s119, %s121
      %p125 = scmp.eq.s32.totalorder %s17, 0
      %p126 = por %p124, %p125
      %p127 = scmp.ne.s32.totalorder %s119, %s121
      %p128 = scmp.eq.s32.totalorder %s22, 1
      %p129 = por %p127, %p128
      %p130 = scmp.ne.s32.totalorder %s121, %s122
      %p131 = scmp.eq.s32.totalorder %s22, 0
      %p132 = por %p130, %p131
      %p133 = scmp.ne.s32.totalorder %s121, %s122
      %p134 = scmp.eq.s32.totalorder %s23, 1
      %p135 = por %p133, %p134
      %p137 = scmp.ne.s32.totalorder %s122, %s136
      %p138 = scmp.eq.s32.totalorder %s23, 0
      %p139 = por %p137, %p138
      %s141 = sadd.s32 %s140, 1
      %p144 = scmp.eq.s32.totalorder %s17, 1
      %p145 = scmp.ne.s32.totalorder %s140, %s142
      %p146 = scmp.eq.s32.totalorder %s17, 0
      %p147 = por %p145, %p146
      %p148 = scmp.ne.s32.totalorder %s140, %s142
      %p149 = scmp.eq.s32.totalorder %s22, 1
      %p150 = por %p148, %p149
      %p151 = scmp.ne.s32.totalorder %s142, %s143
      %p152 = scmp.eq.s32.totalorder %s22, 0
      %p153 = por %p151, %p152
      %p154 = scmp.ne.s32.totalorder %s142, %s143
      %p155 = scmp.eq.s32.totalorder %s23, 1
      %p156 = por %p154, %p155
      %p158 = scmp.ne.s32.totalorder %s143, %s157
      %p159 = scmp.eq.s32.totalorder %s23, 0
      %p160 = por %p158, %p159
      %s162 = sadd.s32 %s161, 1
      %p165 = scmp.eq.s32.totalorder %s17, 1
      %p166 = scmp.ne.s32.totalorder %s161, %s163
      %p167 = scmp.eq.s32.totalorder %s17, 0
      %p168 = por %p166, %p167
      %p169 = scmp.ne.s32.totalorder %s161, %s163
      %p170 = scmp.eq.s32.totalorder %s22, 1
      %p171 = por %p169, %p170
      %p172 = scmp.ne.s32.totalorder %s163, %s164
      %p173 = scmp.eq.s32.totalorder %s22, 0
      %p174 = por %p172, %p173
      %p175 = scmp.ne.s32.totalorder %s163, %s164
      %p176 = scmp.eq.s32.totalorder %s23, 1
      %p177 = por %p175, %p176
      %p179 = scmp.ne.s32.totalorder %s164, %s178
      %p180 = scmp.eq.s32.totalorder %s23, 0
      %p181 = por %p179, %p180
      %s183 = sadd.s32 %s182, 1
      %p186 = scmp.eq.s32.totalorder %s17, 1
      %p187 = scmp.ne.s32.totalorder %s182, %s184
      %p188 = scmp.eq.s32.totalorder %s17, 0
      %p189 = por %p187, %p188
      %p190 = scmp.ne.s32.totalorder %s182, %s184
      %p191 = scmp.eq.s32.totalorder %s22, 1
      %p192 = por %p190, %p191
      %p193 = scmp.ne.s32.totalorder %s184, %s185
      %p194 = scmp.eq.s32.totalorder %s22, 0
      %p195 = por %p193, %p194
      %p196 = scmp.ne.s32.totalorder %s184, %s185
      %p197 = scmp.eq.s32.totalorder %s23, 1
      %p198 = por %p196, %p197
      %p200 = scmp.ne.s32.totalorder %s185, %s199
      %p201 = scmp.eq.s32.totalorder %s23, 0
      %p202 = por %p200, %p201
      %s203 = ssub.s32 %s17, %s24
      %p204 = scmp.eq.s32.totalorder %s203, 0
      %s206 = sadd.s32 %s205, 1
      %s207 = scalar_select %p204, %s205, %s206
      %p210 = pneg %p204
      %p211 = scmp.eq.s32.totalorder %s17, 1
      %p212 = por %p210, %p211
      %p213 = scmp.ne.s32.totalorder %s205, %s208
      %p214 = scmp.eq.s32.totalorder %s17, 0
      %p215 = por %p213, %p214
      %p216 = scmp.ne.s32.totalorder %s205, %s208
      %p217 = scmp.eq.s32.totalorder %s22, 1
      %p218 = por %p216, %p217
      %p219 = scmp.ne.s32.totalorder %s208, %s209
      %p220 = scmp.eq.s32.totalorder %s22, 0
      %p221 = por %p219, %p220
      %p222 = scmp.ne.s32.totalorder %s208, %s209
      %p223 = scmp.eq.s32.totalorder %s23, 1
      %p224 = por %p222, %p223
      %p226 = scmp.ne.s32.totalorder %s209, %s225
      %p227 = scmp.eq.s32.totalorder %s23, 0
      %p228 = por %p226, %p227
      %p229 = scmp.le.s32.totalorder 1, %s17
      %p230 = scmp.lt.s32.totalorder %s17, 3
      %p231 = pnand %p229, %p230
      %p232 = pneg %p231
      // Predicated region
      $region9: #{tpu_custom_call.1} parent=5 // pred_check
        _
      $region10: #{tpu_custom_call.1} parent=5 // pred_check_branch
        %234 = sbr.rel (%p231) target = $region12
      $region11: #{tpu_custom_call.1} parent=5 // pred_region
        %s235 = ssub.s32 %s17, 1
        // Predicated region
        $region13: #{tpu_custom_call.1} parent=11 // pred_check
          %p236 = pneg %p90
        $region14: #{tpu_custom_call.1} parent=11 // pred_check_branch
          %238 = sbr.rel (%p236) target = $region16
        $region15: #{tpu_custom_call.1} parent=11 // pred_region
          _
        $region16: #{tpu_custom_call.1} parent=11 // pred_fallthru
          _
        // Predicated region
        $region17: #{tpu_custom_call.1} parent=11 // pred_check
          %p239 = pneg %p111
        $region18: #{tpu_custom_call.1} parent=11 // pred_check_branch
          %241 = sbr.rel (%p239) target = $region20
        $region19: #{tpu_custom_call.1} parent=11 // pred_region
          _
        $region20: #{tpu_custom_call.1} parent=11 // pred_fallthru
          _
        // Predicated region
        $region21: #{tpu_custom_call.1} parent=11 // pred_check
          %p242 = pneg %p132
        $region22: #{tpu_custom_call.1} parent=11 // pred_check_branch
          %244 = sbr.rel (%p242) target = $region24
        $region23: #{tpu_custom_call.1} parent=11 // pred_region
          _
        $region24: #{tpu_custom_call.1} parent=11 // pred_fallthru
          _
        // Predicated region
        $region25: #{tpu_custom_call.1} parent=11 // pred_check
          %p245 = pneg %p153
        $region26: #{tpu_custom_call.1} parent=11 // pred_check_branch
          %247 = sbr.rel (%p245) target = $region28
        $region27: #{tpu_custom_call.1} parent=11 // pred_region
          _
        $region28: #{tpu_custom_call.1} parent=11 // pred_fallthru
          _
        // Predicated region
        $region29: #{tpu_custom_call.1} parent=11 // pred_check
          %p248 = pneg %p174
        $region30: #{tpu_custom_call.1} parent=11 // pred_check_branch
          %250 = sbr.rel (%p248) target = $region32
        $region31: #{tpu_custom_call.1} parent=11 // pred_region
          _
        $region32: #{tpu_custom_call.1} parent=11 // pred_fallthru
          _
        // Predicated region
        $region33: #{tpu_custom_call.1} parent=11 // pred_check
          %p251 = pneg %p195
        $region34: #{tpu_custom_call.1} parent=11 // pred_check_branch
          %253 = sbr.rel (%p251) target = $region36
        $region35: #{tpu_custom_call.1} parent=11 // pred_region
          _
        $region36: #{tpu_custom_call.1} parent=11 // pred_fallthru
          _
      $region12: #{tpu_custom_call.1} parent=5 // pred_fallthru
        _
      %p254 = scmp.lt.s32.totalorder %s17, 2
      // Predicated region
      $region37: #{tpu_custom_call.1} parent=5 // pred_check
        %p255 = pneg %p254
      $region38: #{tpu_custom_call.1} parent=5 // pred_check_branch
        %257 = sbr.rel (%p255) target = $region40
      $region39: #{tpu_custom_call.1} parent=5 // pred_region
        // Predicated region
        $region41: #{tpu_custom_call.1} parent=39 // pred_check
          %p258 = pneg %p37
        $region42: #{tpu_custom_call.1} parent=39 // pred_check_branch
          %260 = sbr.rel (%p258) target = $region44
        $region43: #{tpu_custom_call.1} parent=39 // pred_region
          %s261 = smul.u32 16, %s17
          %p262 = scmp.lt.s32.totalorder %s261, 31
          %s263 = scalar_select %p262, %s261, 31
          %s264 = smul.addr %s263, 4
          %s265 = scalar_lea.vmem %s0, %s264
          %s266 = smul.u32 16, %s17
        $region44: #{tpu_custom_call.1} parent=39 // pred_fallthru
          _
        // Predicated region
        $region45: #{tpu_custom_call.1} parent=39 // pred_check
          %p267 = pneg %p63
        $region46: #{tpu_custom_call.1} parent=39 // pred_check_branch
          %269 = sbr.rel (%p267) target = $region48
        $region47: #{tpu_custom_call.1} parent=39 // pred_region
          %s270 = smul.u32 2, %s17
          %p271 = scmp.lt.s32.totalorder %s270, 3
          %s272 = scalar_select %p271, %s270, 3
          %s273 = smul.addr %s272, 4
          %s274 = scalar_lea.vmem %s1, %s273
          %s275 = smul.u32 2, %s17
        $region48: #{tpu_custom_call.1} parent=39 // pred_fallthru
          _
      $region40: #{tpu_custom_call.1} parent=5 // pred_fallthru
        _
      %p276 = scmp.le.s32.totalorder 1, %s17
      %p277 = scmp.lt.s32.totalorder %s17, 3
      %p278 = pnand %p276, %p277
      %p279 = pneg %p278
      // Predicated region
      $region49: #{tpu_custom_call.1} parent=5 // pred_check
        _
      $region50: #{tpu_custom_call.1} parent=5 // pred_check_branch
        %281 = sbr.rel (%p278) target = $region52
      $region51: #{tpu_custom_call.1} parent=5 // pred_region
        %s282 = ssub.s32 %s17, 1
        %s283 = smul.u32 16, %s22
        %p284 = scmp.lt.s32.totalorder %s283, 31
        %s285 = scalar_select %p284, %s283, 31
        %s286 = smul.addr %s285, 4
        %s287 = scalar_lea.vmem %s0, %s286
        %p288 = pneg %p43
        %p289 = pneg %p40
        %s290 = smul.u32 2, %s22
        %p291 = scmp.lt.s32.totalorder %s290, 3
        %s292 = scalar_select %p291, %s290, 3
        %s293 = smul.addr %s292, 4
        %s294 = scalar_lea.vmem %s1, %s293
        %p295 = pneg %p69
        %p296 = pneg %p66
        %p297 = pneg %p90
        %p298 = pneg %p87
        %p299 = pneg %p111
        %p300 = pneg %p108
        %p301 = pneg %p132
        %p302 = pneg %p129
        %p303 = pneg %p153
        %p304 = pneg %p150
        %p305 = pneg %p174
        %p306 = pneg %p171
        %p307 = pneg %p195
        %p308 = pneg %p192
        %p309 = pneg %p221
        %p310 = pneg %p218
        %s311 = sand.u32 %s208, 1
        %s312 = scalar_lea.sflag [#allocation3], %s311
        %s313 = sand.u32 %s208, 1
        %s314 = smul.addr %s313, 16
        %s315 = scalar_lea.vmem [#allocation2], %s314
        %s316 = smul.u32 16, %s22
        %p317 = scmp.lt.s32.totalorder %s316, 31
        %s318 = scalar_select %p317, %s316, 31
        %s319 = smul.addr %s318, 4
        %s320 = scalar_lea.vmem %s0, %s319
        %s321 = smul.u32 16, %s22
        %s322 = smul.u32 2, %s22
        %p323 = scmp.lt.s32.totalorder %s322, 3
        %s324 = scalar_select %p323, %s322, 3
        %s325 = smul.addr %s324, 4
        %s326 = scalar_lea.vmem %s1, %s325
        %s327 = smul.u32 2, %s22
        %s328 = smul.u32 2, %s22
        %v330 = vld [vmem:[%s320] sm:$0xf]
        %v331 = vld [vmem:[%s320 + $0x4] sm:$0xf]
        %v332 = vld [vmem:[%s320 + $0x8] sm:$0xf]
        %v333 = vld [vmem:[%s320 + $0xc] sm:$0xf]
        %v334 = vld [vmem:[%s320 + $0x10] sm:$0xf]
        %v335 = vld [vmem:[%s320 + $0x14] sm:$0xf]
        %v336 = vld [vmem:[%s320 + $0x18] sm:$0xf]
        %v337 = vld [vmem:[%s320 + $0x1c] sm:$0xf]
        %v338 = vld [vmem:[%s320 + $0x20] sm:$0xf]
        %v339 = vld [vmem:[%s320 + $0x24] sm:$0xf]
        %v340 = vld [vmem:[%s320 + $0x28] sm:$0xf]
        %v341 = vld [vmem:[%s320 + $0x2c] sm:$0xf]
        %v342 = vld [vmem:[%s320 + $0x30] sm:$0xf]
        %v343 = vld [vmem:[%s320 + $0x34] sm:$0xf]
        %v344 = vld [vmem:[%s320 + $0x38] sm:$0xf]
        %v345 = vld [vmem:[%s320 + $0x3c] sm:$0xf]
        %v346 = vld [vmem:[%s326] sm:$0xf]
        %v347 = vld [vmem:[%s326 + $0x4] sm:$0xf]
        %v348 = vld [vmem:[%s3] sm:$0xf]
        %v349 = vld [vmem:[%s3 + $0x4] sm:$0xf]
        %v350 = vld [vmem:[%s3 + $0x8] sm:$0xf]
        %v351 = vld [vmem:[%s3 + $0xc] sm:$0xf]
        %v368 = vunpack.c.l.b16 %v330
        %v369 = vunpack.c.l.b16 %v331
        %v370 = vunpack.c.l.b16 %v332
        %v371 = vunpack.c.l.b16 %v333
        %v372 = vunpack.c.l.b16 %v334
        %v373 = vunpack.c.l.b16 %v335
        %v374 = vunpack.c.l.b16 %v336
        %v375 = vunpack.c.l.b16 %v337
        %v376 = vunpack.c.l.b16 %v338
        %v377 = vunpack.c.l.b16 %v339
        %v378 = vunpack.c.l.b16 %v340
        %v379 = vunpack.c.l.b16 %v341
        %v380 = vunpack.c.l.b16 %v342
        %v381 = vunpack.c.l.b16 %v343
        %v382 = vunpack.c.l.b16 %v344
        %v383 = vunpack.c.l.b16 %v345
        %v384 = vpack.c.b16 %v369, %v368
        %v385 = vpack.c.b16 %v371, %v370
        %v386 = vpack.c.b16 %v373, %v372
        %v387 = vpack.c.b16 %v375, %v374
        %v388 = vpack.c.b16 %v377, %v376
        %v389 = vpack.c.b16 %v379, %v378
        %v390 = vpack.c.b16 %v381, %v380
        %v391 = vpack.c.b16 %v383, %v382
        %v396 = vunpack.c.l.b16 %v348
        %v397 = vunpack.c.l.b16 %v349
        %v398 = vunpack.c.l.b16 %v350
        %v399 = vunpack.c.l.b16 %v351
        %v400 = vpack.c.b16 %v397, %v396
        %v401 = vpack.c.b16 %v399, %v398
        %vm404 = vcmask 261120
        %v406 = vsel %vm404, %v384, 0
        %v409 = vsel %vm404, %v385, 0
        %v412 = vsel %vm404, %v386, 0
        %v415 = vsel %vm404, %v387, 0
        %v418 = vsel %vm404, %v388, 0
        %v421 = vsel %vm404, %v389, 0
        %v424 = vsel %vm404, %v390, 0
        %v427 = vsel %vm404, %v391, 0
        %429 = vmatprep.subr.bf16.mxu0 0
        %430 = vmatpush1.bf16.msra.mxu0 %v400
        %431 = vmatprep.subr.bf16.mxu0 0
        %432 = vmatpush1.bf16.msra.mxu0 %v401
        %433 = vmatprep.subr.bf16.mxu0 0
        %434 = vmatpush1.bf16.msra.mxu0 0
        %435 = vmatprep.subr.bf16.mxu0 0
        %436 = vmatpush1.bf16.msra.mxu0 0
        %437 = vmatprep.subr.bf16.mxu0 0
        %438 = vmatpush1.bf16.msra.mxu0 0
        %439 = vmatprep.subr.bf16.mxu0 0
        %440 = vmatpush1.bf16.msra.mxu0 0
        %441 = vmatprep.subr.bf16.mxu0 0
        %442 = vmatpush1.bf16.msra.mxu0 0
        %443 = vmatprep.subr.bf16.mxu0 0
        %444 = vmatpush1.bf16.msra.mxu0 0
        %445 = vmatprep.subr.bf16.mxu0 0
        %446 = vmatpush1.bf16.msra.mxu0 0
        %447 = vmatprep.subr.bf16.mxu0 0
        %448 = vmatpush1.bf16.msra.mxu0 0
        %449 = vmatprep.subr.bf16.mxu0 0
        %450 = vmatpush1.bf16.msra.mxu0 0
        %451 = vmatprep.subr.bf16.mxu0 0
        %452 = vmatpush1.bf16.msra.mxu0 0
        %453 = vmatprep.subr.bf16.mxu0 0
        %454 = vmatpush1.bf16.msra.mxu0 0
        %455 = vmatprep.subr.bf16.mxu0 0
        %456 = vmatpush1.bf16.msra.mxu0 0
        %457 = vmatprep.subr.bf16.mxu0 0
        %458 = vmatpush1.bf16.msra.mxu0 0
        %459 = vmatprep.subr.bf16.mxu0 0
        %460 = vmatpush1.bf16.msra.mxu0 0
        %461 = vmatprep.mubr.bf16.mxu0 0
        %462 = vmatmul.mubr.bf16.gmra.mrb[0].mxu0 %v406
        %v463 = vpop.f32.mrb[0].mxu0
        %v464 = vadd.f32 0.0, %v463
        %v465 = vpop.f32.mrb[0].mxu0
        %v466 = vpop.f32.mrb[0].mxu0
        %v467 = vadd.f32 0.0, %v466
        %v468 = vpop.f32.mrb[0].mxu0
        %469 = vmatprep.mubr.bf16.mxu0 0
        %470 = vmatmul.mubr.bf16.gmra.mrb[0].mxu0 %v409
        %v471 = vpop.f32.mrb[0].mxu0
        %v472 = vadd.f32 0.0, %v471
        %v473 = vpop.f32.mrb[0].mxu0
        %v474 = vpop.f32.mrb[0].mxu0
        %v475 = vadd.f32 0.0, %v474
        %v476 = vpop.f32.mrb[0].mxu0
        %477 = vmatprep.mubr.bf16.mxu0 0
        %478 = vmatmul.mubr.bf16.gmra.mrb[0].mxu0 %v412
        %v479 = vpop.f32.mrb[0].mxu0
        %v480 = vadd.f32 0.0, %v479
        %v481 = vpop.f32.mrb[0].mxu0
        %v482 = vpop.f32.mrb[0].mxu0
        %v483 = vadd.f32 0.0, %v482
        %v484 = vpop.f32.mrb[0].mxu0
        %485 = vmatprep.mubr.bf16.mxu0 0
        %486 = vmatmul.mubr.bf16.gmra.mrb[0].mxu0 %v415
        %v487 = vpop.f32.mrb[0].mxu0
        %v488 = vadd.f32 0.0, %v487
        %v489 = vpop.f32.mrb[0].mxu0
        %v490 = vpop.f32.mrb[0].mxu0
        %v491 = vadd.f32 0.0, %v490
        %v492 = vpop.f32.mrb[0].mxu0
        %493 = vmatprep.mubr.bf16.mxu0 0
        %494 = vmatmul.mubr.bf16.gmra.mrb[0].mxu0 %v418
        %v495 = vpop.f32.mrb[0].mxu0
        %v496 = vadd.f32 0.0, %v495
        %v497 = vpop.f32.mrb[0].mxu0
        %v498 = vpop.f32.mrb[0].mxu0
        %v499 = vadd.f32 0.0, %v498
        %v500 = vpop.f32.mrb[0].mxu0
        %501 = vmatprep.mubr.bf16.mxu0 0
        %502 = vmatmul.mubr.bf16.gmra.mrb[0].mxu0 %v421
        %v503 = vpop.f32.mrb[0].mxu0
        %v504 = vadd.f32 0.0, %v503
        %v505 = vpop.f32.mrb[0].mxu0
        %v506 = vpop.f32.mrb[0].mxu0
        %v507 = vadd.f32 0.0, %v506
        %v508 = vpop.f32.mrb[0].mxu0
        %509 = vmatprep.mubr.bf16.mxu0 0
        %510 = vmatmul.mubr.bf16.gmra.mrb[0].mxu0 %v424
        %v511 = vpop.f32.mrb[0].mxu0
        %v512 = vadd.f32 0.0, %v511
        %v513 = vpop.f32.mrb[0].mxu0
        %v514 = vpop.f32.mrb[0].mxu0
        %v515 = vadd.f32 0.0, %v514
        %v516 = vpop.f32.mrb[0].mxu0
        %517 = vmatprep.mubr.bf16.mxu0 0
        %518 = vmatmul.mubr.bf16.gmra.mrb[0].mxu0 %v427
        %v519 = vpop.f32.mrb[0].mxu0
        %v520 = vadd.f32 0.0, %v519
        %v521 = vpop.f32.mrb[0].mxu0
        %v522 = vpop.f32.mrb[0].mxu0
        %v523 = vadd.f32 0.0, %v522
        %v524 = vpop.f32.mrb[0].mxu0
        %525 = vdwg.mxu0
        %v526 = vld [vmem:[%s2] sm:$0xf]
        %v527 = vld [vmem:[%s2 + $0x4] sm:$0xf]
        %v528 = vld [vmem:[%s2 + $0x8] sm:$0xf]
        %v529 = vld [vmem:[%s2 + $0xc] sm:$0xf]
        %v532 = vunpack.c.l.b16 %v346
        %v533 = vunpack.c.l.b16 %v347
        %v534 = vpack.c.b16 %v533, %v532
        %v539 = vunpack.c.l.b16 %v526
        %v540 = vunpack.c.l.b16 %v527
        %v541 = vunpack.c.l.b16 %v528
        %v542 = vunpack.c.l.b16 %v529
        %v543 = vpack.c.b16 %v540, %v539
        %v544 = vpack.c.b16 %v542, %v541
        %v548 = vsel %vm404, %v534, 0
        %550 = vmatprep.subr.bf16.mxu0 0
        %551 = vmatpush1.bf16.msra.mxu0 %v543
        %552 = vmatprep.subr.bf16.mxu0 0
        %553 = vmatpush1.bf16.msra.mxu0 %v544
        %554 = vmatprep.subr.bf16.mxu0 0
        %555 = vmatpush1.bf16.msra.mxu0 0
        %556 = vmatprep.subr.bf16.mxu0 0
        %557 = vmatpush1.bf16.msra.mxu0 0
        %558 = vmatprep.subr.bf16.mxu0 0
        %559 = vmatpush1.bf16.msra.mxu0 0
        %560 = vmatprep.subr.bf16.mxu0 0
        %561 = vmatpush1.bf16.msra.mxu0 0
        %562 = vmatprep.subr.bf16.mxu0 0
        %563 = vmatpush1.bf16.msra.mxu0 0
        %564 = vmatprep.subr.bf16.mxu0 0
        %565 = vmatpush1.bf16.msra.mxu0 0
        %566 = vmatprep.subr.bf16.mxu0 0
        %567 = vmatpush1.bf16.msra.mxu0 0
        %568 = vmatprep.subr.bf16.mxu0 0
        %569 = vmatpush1.bf16.msra.mxu0 0
        %570 = vmatprep.subr.bf16.mxu0 0
        %571 = vmatpush1.bf16.msra.mxu0 0
        %572 = vmatprep.subr.bf16.mxu0 0
        %573 = vmatpush1.bf16.msra.mxu0 0
        %574 = vmatprep.subr.bf16.mxu0 0
        %575 = vmatpush1.bf16.msra.mxu0 0
        %576 = vmatprep.subr.bf16.mxu0 0
        %577 = vmatpush1.bf16.msra.mxu0 0
        %578 = vmatprep.subr.bf16.mxu0 0
        %579 = vmatpush1.bf16.msra.mxu0 0
        %580 = vmatprep.subr.bf16.mxu0 0
        %581 = vmatpush1.bf16.msra.mxu0 0
        %582 = vmatprep.mubr.bf16.mxu0 0
        %583 = vmatmul.mubr.bf16.gmra.mrb[0].mxu0 %v548
        %v584 = vpop.f32.mrb[0].mxu0
        %v585 = vadd.f32 0.0, %v584
        %v586 = vpop.f32.mrb[0].mxu0
        %v587 = vpop.f32.mrb[0].mxu0
        %v588 = vadd.f32 0.0, %v587
        %v589 = vpop.f32.mrb[0].mxu0
        %590 = vdwg.mxu0
        %v593 = vcombine.high %v585, %v585
        %v595 = vunpack.c.l.s4 1966171168
        %v596 = vunpack.c.0.s8 %v595
        %v597 = vlaneseq
        %v598 = vshrl.u32 %v597, 7
        %v599 = vsub.s32 %v596, %v598
        %v600 = vrot.slane %v585, %v599
        %v602 = vunpack.c.l.s4 1966171168
        %v603 = vunpack.c.0.s8 %v602
        %v604 = vlaneseq
        %v605 = vshrl.u32 %v604, 7
        %v606 = vsub.s32 %v603, %v605
        %v607 = vrot.slane %v593, %v606
        %v608 = vcombine.high %v600, %v600
        %v609 = vcombine.high %v607, %v607
        %v611 = vunpack.c.l.s4 1966171168
        %v612 = vunpack.c.0.s8 %v611
        %v613 = vlaneseq
        %v614 = vshrl.u32 %v613, 7
        %v615 = vsub.s32 %v612, %v614
        %v616 = vrot.slane %v600, %v615
        %v618 = vunpack.c.l.s4 1966171168
        %v619 = vunpack.c.0.s8 %v618
        %v620 = vlaneseq
        %v621 = vshrl.u32 %v620, 7
        %v622 = vsub.s32 %v619, %v621
        %v623 = vrot.slane %v607, %v622
        %v625 = vunpack.c.l.s4 1966171168
        %v626 = vunpack.c.0.s8 %v625
        %v627 = vlaneseq
        %v628 = vshrl.u32 %v627, 7
        %v629 = vsub.s32 %v626, %v628
        %v630 = vrot.slane %v608, %v629
        %v632 = vunpack.c.l.s4 1966171168
        %v633 = vunpack.c.0.s8 %v632
        %v634 = vlaneseq
        %v635 = vshrl.u32 %v634, 7
        %v636 = vsub.s32 %v633, %v635
        %v637 = vrot.slane %v609, %v636
        %v638 = vcombine.high %v616, %v616
        %v639 = vcombine.high %v623, %v623
        %v640 = vcombine.high %v630, %v630
        %v641 = vcombine.high %v637, %v637
        %v642 = vcombine.high %v588, %v588
        %v644 = vunpack.c.l.s4 1966171168
        %v645 = vunpack.c.0.s8 %v644
        %v646 = vlaneseq
        %v647 = vshrl.u32 %v646, 7
        %v648 = vsub.s32 %v645, %v647
        %v649 = vrot.slane %v588, %v648
        %v651 = vunpack.c.l.s4 1966171168
        %v652 = vunpack.c.0.s8 %v651
        %v653 = vlaneseq
        %v654 = vshrl.u32 %v653, 7
        %v655 = vsub.s32 %v652, %v654
        %v656 = vrot.slane %v642, %v655
        %v657 = vcombine.high %v649, %v649
        %v658 = vcombine.high %v656, %v656
        %v660 = vunpack.c.l.s4 1966171168
        %v661 = vunpack.c.0.s8 %v660
        %v662 = vlaneseq
        %v663 = vshrl.u32 %v662, 7
        %v664 = vsub.s32 %v661, %v663
        %v665 = vrot.slane %v649, %v664
        %v667 = vunpack.c.l.s4 1966171168
        %v668 = vunpack.c.0.s8 %v667
        %v669 = vlaneseq
        %v670 = vshrl.u32 %v669, 7
        %v671 = vsub.s32 %v668, %v670
        %v672 = vrot.slane %v656, %v671
        %v674 = vunpack.c.l.s4 1966171168
        %v675 = vunpack.c.0.s8 %v674
        %v676 = vlaneseq
        %v677 = vshrl.u32 %v676, 7
        %v678 = vsub.s32 %v675, %v677
        %v679 = vrot.slane %v657, %v678
        %v681 = vunpack.c.l.s4 1966171168
        %v682 = vunpack.c.0.s8 %v681
        %v683 = vlaneseq
        %v684 = vshrl.u32 %v683, 7
        %v685 = vsub.s32 %v682, %v684
        %v686 = vrot.slane %v658, %v685
        %v687 = vcombine.high %v665, %v665
        %v688 = vcombine.high %v672, %v672
        %v689 = vcombine.high %v679, %v679
        %v690 = vcombine.high %v686, %v686
        %v691 = vlaneseq
        %v692 = vshrl.u32 %v691, 7
        %v693 = vsub.s32 0, %v692
        %v694 = vrot.slane %v616, %v693
        %v695 = vlaneseq
        %v696 = vshrl.u32 %v695, 7
        %v697 = vsub.s32 0, %v696
        %v698 = vrot.slane %v630, %v697
        %v699 = vlaneseq
        %v700 = vshrl.u32 %v699, 7
        %v701 = vsub.s32 0, %v700
        %v702 = vrot.slane %v638, %v701
        %v703 = vlaneseq
        %v704 = vshrl.u32 %v703, 7
        %v705 = vsub.s32 0, %v704
        %v706 = vrot.slane %v640, %v705
        %v707 = vlaneseq
        %v708 = vshrl.u32 %v707, 7
        %v709 = vsub.s32 0, %v708
        %v710 = vrot.slane %v623, %v709
        %v711 = vlaneseq
        %v712 = vshrl.u32 %v711, 7
        %v713 = vsub.s32 0, %v712
        %v714 = vrot.slane %v637, %v713
        %v715 = vlaneseq
        %v716 = vshrl.u32 %v715, 7
        %v717 = vsub.s32 0, %v716
        %v718 = vrot.slane %v639, %v717
        %v719 = vlaneseq
        %v720 = vshrl.u32 %v719, 7
        %v721 = vsub.s32 0, %v720
        %v722 = vrot.slane %v641, %v721
        %v723 = vlaneseq
        %v724 = vshrl.u32 %v723, 7
        %v725 = vsub.s32 0, %v724
        %v726 = vrot.slane %v665, %v725
        %v727 = vlaneseq
        %v728 = vshrl.u32 %v727, 7
        %v729 = vsub.s32 0, %v728
        %v730 = vrot.slane %v679, %v729
        %v731 = vlaneseq
        %v732 = vshrl.u32 %v731, 7
        %v733 = vsub.s32 0, %v732
        %v734 = vrot.slane %v687, %v733
        %v735 = vlaneseq
        %v736 = vshrl.u32 %v735, 7
        %v737 = vsub.s32 0, %v736
        %v738 = vrot.slane %v689, %v737
        %v739 = vlaneseq
        %v740 = vshrl.u32 %v739, 7
        %v741 = vsub.s32 0, %v740
        %v742 = vrot.slane %v672, %v741
        %v743 = vlaneseq
        %v744 = vshrl.u32 %v743, 7
        %v745 = vsub.s32 0, %v744
        %v746 = vrot.slane %v686, %v745
        %v747 = vlaneseq
        %v748 = vshrl.u32 %v747, 7
        %v749 = vsub.s32 0, %v748
        %v750 = vrot.slane %v688, %v749
        %v751 = vlaneseq
        %v752 = vshrl.u32 %v751, 7
        %v753 = vsub.s32 0, %v752
        %v754 = vrot.slane %v690, %v753
        %v771 = vmul.f32 %v464, %v694
        %v772 = vmul.f32 %v467, %v698
        %v773 = vmul.f32 %v472, %v702
        %v774 = vmul.f32 %v475, %v706
        %v775 = vmul.f32 %v480, %v710
        %v776 = vmul.f32 %v483, %v714
        %v777 = vmul.f32 %v488, %v718
        %v778 = vmul.f32 %v491, %v722
        %v779 = vmul.f32 %v496, %v726
        %v780 = vmul.f32 %v499, %v730
        %v781 = vmul.f32 %v504, %v734
        %v782 = vmul.f32 %v507, %v738
        %v783 = vmul.f32 %v512, %v742
        %v784 = vmul.f32 %v515, %v746
        %v785 = vmul.f32 %v520, %v750
        %v786 = vmul.f32 %v523, %v754
        %v787 = vpack.c.bf16 %v772, %v771
        %v788 = vpack.c.bf16 %v774, %v773
        %v789 = vpack.c.bf16 %v776, %v775
        %v790 = vpack.c.bf16 %v778, %v777
        %v791 = vpack.c.bf16 %v780, %v779
        %v792 = vpack.c.bf16 %v782, %v781
        %v793 = vpack.c.bf16 %v784, %v783
        %v794 = vpack.c.bf16 %v786, %v785
        %v795 = vld [vmem:[%s6] sm:$0xf]
        %v796 = vld [vmem:[%s6 + $0x4] sm:$0xf]
        %v797 = vld [vmem:[%s6 + $0x8] sm:$0xf]
        %v798 = vld [vmem:[%s6 + $0xc] sm:$0xf]
        %v803 = vunpack.c.l.b16 %v795
        %v804 = vunpack.c.l.b16 %v796
        %v805 = vunpack.c.l.b16 %v797
        %v806 = vunpack.c.l.b16 %v798
        %v807 = vpack.c.b16 %v804, %v803
        %v808 = vpack.c.b16 %v806, %v805
        %v812 = vsel %vm404, %v787, 0
        %v815 = vsel %vm404, %v788, 0
        %v818 = vsel %vm404, %v789, 0
        %v821 = vsel %vm404, %v790, 0
        %v824 = vsel %vm404, %v791, 0
        %v827 = vsel %vm404, %v792, 0
        %v830 = vsel %vm404, %v793, 0
        %v833 = vsel %vm404, %v794, 0
        %835 = vmatprep.subr.bf16.mxu0 0
        %836 = vmatpush1.bf16.msra.mxu0 %v807
        %837 = vmatprep.subr.bf16.mxu0 0
        %838 = vmatpush1.bf16.msra.mxu0 %v808
        %839 = vmatprep.subr.bf16.mxu0 0
        %840 = vmatpush1.bf16.msra.mxu0 0
        %841 = vmatprep.subr.bf16.mxu0 0
        %842 = vmatpush1.bf16.msra.mxu0 0
        %843 = vmatprep.subr.bf16.mxu0 0
        %844 = vmatpush1.bf16.msra.mxu0 0
        %845 = vmatprep.subr.bf16.mxu0 0
        %846 = vmatpush1.bf16.msra.mxu0 0
        %847 = vmatprep.subr.bf16.mxu0 0
        %848 = vmatpush1.bf16.msra.mxu0 0
        %849 = vmatprep.subr.bf16.mxu0 0
        %850 = vmatpush1.bf16.msra.mxu0 0
        %851 = vmatprep.subr.bf16.mxu0 0
        %852 = vmatpush1.bf16.msra.mxu0 0
        %853 = vmatprep.subr.bf16.mxu0 0
        %854 = vmatpush1.bf16.msra.mxu0 0
        %855 = vmatprep.subr.bf16.mxu0 0
        %856 = vmatpush1.bf16.msra.mxu0 0
        %857 = vmatprep.subr.bf16.mxu0 0
        %858 = vmatpush1.bf16.msra.mxu0 0
        %859 = vmatprep.subr.bf16.mxu0 0
        %860 = vmatpush1.bf16.msra.mxu0 0
        %861 = vmatprep.subr.bf16.mxu0 0
        %862 = vmatpush1.bf16.msra.mxu0 0
        %863 = vmatprep.subr.bf16.mxu0 0
        %864 = vmatpush1.bf16.msra.mxu0 0
        %865 = vmatprep.subr.bf16.mxu0 0
        %866 = vmatpush1.bf16.msra.mxu0 0
        %867 = vmatprep.mubr.bf16.mxu0 0
        %868 = vmatmul.mubr.bf16.gmra.mrb[0].mxu0 %v812
        %v869 = vpop.f32.mrb[0].mxu0
        %v870 = vadd.f32 0.0, %v869
        %v871 = vpop.f32.mrb[0].mxu0
        %v872 = vpop.f32.mrb[0].mxu0
        %v873 = vadd.f32 0.0, %v872
        %v874 = vpop.f32.mrb[0].mxu0
        %875 = vmatprep.mubr.bf16.mxu0 0
        %876 = vmatmul.mubr.bf16.gmra.mrb[0].mxu0 %v815
        %v877 = vpop.f32.mrb[0].mxu0
        %v878 = vadd.f32 0.0, %v877
        %v879 = vpop.f32.mrb[0].mxu0
        %v880 = vpop.f32.mrb[0].mxu0
        %v881 = vadd.f32 0.0, %v880
        %v882 = vpop.f32.mrb[0].mxu0
        %883 = vmatprep.mubr.bf16.mxu0 0
        %884 = vmatmul.mubr.bf16.gmra.mrb[0].mxu0 %v818
        %v885 = vpop.f32.mrb[0].mxu0
        %v886 = vadd.f32 0.0, %v885
        %v887 = vpop.f32.mrb[0].mxu0
        %v888 = vpop.f32.mrb[0].mxu0
        %v889 = vadd.f32 0.0, %v888
        %v890 = vpop.f32.mrb[0].mxu0
        %891 = vmatprep.mubr.bf16.mxu0 0
        %892 = vmatmul.mubr.bf16.gmra.mrb[0].mxu0 %v821
        %v893 = vpop.f32.mrb[0].mxu0
        %v894 = vadd.f32 0.0, %v893
        %v895 = vpop.f32.mrb[0].mxu0
        %v896 = vpop.f32.mrb[0].mxu0
        %v897 = vadd.f32 0.0, %v896
        %v898 = vpop.f32.mrb[0].mxu0
        %899 = vmatprep.mubr.bf16.mxu0 0
        %900 = vmatmul.mubr.bf16.gmra.mrb[0].mxu0 %v824
        %v901 = vpop.f32.mrb[0].mxu0
        %v902 = vadd.f32 0.0, %v901
        %v903 = vpop.f32.mrb[0].mxu0
        %v904 = vpop.f32.mrb[0].mxu0
        %v905 = vadd.f32 0.0, %v904
        %v906 = vpop.f32.mrb[0].mxu0
        %907 = vmatprep.mubr.bf16.mxu0 0
        %908 = vmatmul.mubr.bf16.gmra.mrb[0].mxu0 %v827
        %v909 = vpop.f32.mrb[0].mxu0
        %v910 = vadd.f32 0.0, %v909
        %v911 = vpop.f32.mrb[0].mxu0
        %v912 = vpop.f32.mrb[0].mxu0
        %v913 = vadd.f32 0.0, %v912
        %v914 = vpop.f32.mrb[0].mxu0
        %915 = vmatprep.mubr.bf16.mxu0 0
        %916 = vmatmul.mubr.bf16.gmra.mrb[0].mxu0 %v830
        %v917 = vpop.f32.mrb[0].mxu0
        %v918 = vadd.f32 0.0, %v917
        %v919 = vpop.f32.mrb[0].mxu0
        %v920 = vpop.f32.mrb[0].mxu0
        %v921 = vadd.f32 0.0, %v920
        %v922 = vpop.f32.mrb[0].mxu0
        %923 = vmatprep.mubr.bf16.mxu0 0
        %924 = vmatmul.mubr.bf16.gmra.mrb[0].mxu0 %v833
        %v925 = vpop.f32.mrb[0].mxu0
        %v926 = vadd.f32 0.0, %v925
        %v927 = vpop.f32.mrb[0].mxu0
        %v928 = vpop.f32.mrb[0].mxu0
        %v929 = vadd.f32 0.0, %v928
        %v930 = vpop.f32.mrb[0].mxu0
        %931 = vdwg.mxu0
        %vm932 = vcmask 64512
        %v933 = vsel %vm932, %v870, -inf
        %v934 = vrot.slane %v933, 4
        %v935 = vmax.f32 %v933, %v934
        %v936 = vrot.slane %v935, 2
        %v937 = vmax.f32 %v935, %v936
        %v938 = vrot.slane %v937, 1
        %v939 = vmax.f32 %v937, %v938
        %v940 = vsel %vm932, %v873, -inf
        %v941 = vrot.slane %v940, 4
        %v942 = vmax.f32 %v940, %v941
        %v943 = vrot.slane %v942, 2
        %v944 = vmax.f32 %v942, %v943
        %v945 = vrot.slane %v944, 1
        %v946 = vmax.f32 %v944, %v945
        %v947 = vsel %vm932, %v878, -inf
        %v948 = vrot.slane %v947, 4
        %v949 = vmax.f32 %v947, %v948
        %v950 = vrot.slane %v949, 2
        %v951 = vmax.f32 %v949, %v950
        %v952 = vrot.slane %v951, 1
        %v953 = vmax.f32 %v951, %v952
        %v954 = vsel %vm932, %v881, -inf
        %v955 = vrot.slane %v954, 4
        %v956 = vmax.f32 %v954, %v955
        %v957 = vrot.slane %v956, 2
        %v958 = vmax.f32 %v956, %v957
        %v959 = vrot.slane %v958, 1
        %v960 = vmax.f32 %v958, %v959
        %v961 = vsel %vm932, %v886, -inf
        %v962 = vrot.slane %v961, 4
        %v963 = vmax.f32 %v961, %v962
        %v964 = vrot.slane %v963, 2
        %v965 = vmax.f32 %v963, %v964
        %v966 = vrot.slane %v965, 1
        %v967 = vmax.f32 %v965, %v966
        %v968 = vsel %vm932, %v889, -inf
        %v969 = vrot.slane %v968, 4
        %v970 = vmax.f32 %v968, %v969
        %v971 = vrot.slane %v970, 2
        %v972 = vmax.f32 %v970, %v971
        %v973 = vrot.slane %v972, 1
        %v974 = vmax.f32 %v972, %v973
        %v975 = vsel %vm932, %v894, -inf
        %v976 = vrot.slane %v975, 4
        %v977 = vmax.f32 %v975, %v976
        %v978 = vrot.slane %v977, 2
        %v979 = vmax.f32 %v977, %v978
        %v980 = vrot.slane %v979, 1
        %v981 = vmax.f32 %v979, %v980
        %v982 = vsel %vm932, %v897, -inf
        %v983 = vrot.slane %v982, 4
        %v984 = vmax.f32 %v982, %v983
        %v985 = vrot.slane %v984, 2
        %v986 = vmax.f32 %v984, %v985
        %v987 = vrot.slane %v986, 1
        %v988 = vmax.f32 %v986, %v987
        %v989 = vsel %vm932, %v902, -inf
        %v990 = vrot.slane %v989, 4
        %v991 = vmax.f32 %v989, %v990
        %v992 = vrot.slane %v991, 2
        %v993 = vmax.f32 %v991, %v992
        %v994 = vrot.slane %v993, 1
        %v995 = vmax.f32 %v993, %v994
        %v996 = vsel %vm932, %v905, -inf
        %v997 = vrot.slane %v996, 4
        %v998 = vmax.f32 %v996, %v997
        %v999 = vrot.slane %v998, 2
        %v1000 = vmax.f32 %v998, %v999
        %v1001 = vrot.slane %v1000, 1
        %v1002 = vmax.f32 %v1000, %v1001
        %v1003 = vsel %vm932, %v910, -inf
        %v1004 = vrot.slane %v1003, 4
        %v1005 = vmax.f32 %v1003, %v1004
        %v1006 = vrot.slane %v1005, 2
        %v1007 = vmax.f32 %v1005, %v1006
        %v1008 = vrot.slane %v1007, 1
        %v1009 = vmax.f32 %v1007, %v1008
        %v1010 = vsel %vm932, %v913, -inf
        %v1011 = vrot.slane %v1010, 4
        %v1012 = vmax.f32 %v1010, %v1011
        %v1013 = vrot.slane %v1012, 2
        %v1014 = vmax.f32 %v1012, %v1013
        %v1015 = vrot.slane %v1014, 1
        %v1016 = vmax.f32 %v1014, %v1015
        %v1017 = vsel %vm932, %v918, -inf
        %v1018 = vrot.slane %v1017, 4
        %v1019 = vmax.f32 %v1017, %v1018
        %v1020 = vrot.slane %v1019, 2
        %v1021 = vmax.f32 %v1019, %v1020
        %v1022 = vrot.slane %v1021, 1
        %v1023 = vmax.f32 %v1021, %v1022
        %v1024 = vsel %vm932, %v921, -inf
        %v1025 = vrot.slane %v1024, 4
        %v1026 = vmax.f32 %v1024, %v1025
        %v1027 = vrot.slane %v1026, 2
        %v1028 = vmax.f32 %v1026, %v1027
        %v1029 = vrot.slane %v1028, 1
        %v1030 = vmax.f32 %v1028, %v1029
        %v1031 = vsel %vm932, %v926, -inf
        %v1032 = vrot.slane %v1031, 4
        %v1033 = vmax.f32 %v1031, %v1032
        %v1034 = vrot.slane %v1033, 2
        %v1035 = vmax.f32 %v1033, %v1034
        %v1036 = vrot.slane %v1035, 1
        %v1037 = vmax.f32 %v1035, %v1036
        %v1038 = vsel %vm932, %v929, -inf
        %v1039 = vrot.slane %v1038, 4
        %v1040 = vmax.f32 %v1038, %v1039
        %v1041 = vrot.slane %v1040, 2
        %v1042 = vmax.f32 %v1040, %v1041
        %v1043 = vrot.slane %v1042, 1
        %v1044 = vmax.f32 %v1042, %v1043
        %v1045 = vsub.f32 %v870, %v939
        %v1046 = vsub.f32 %v873, %v946
        %v1047 = vsub.f32 %v878, %v953
        %v1048 = vsub.f32 %v881, %v960
        %v1049 = vsub.f32 %v886, %v967
        %v1050 = vsub.f32 %v889, %v974
        %v1051 = vsub.f32 %v894, %v981
        %v1052 = vsub.f32 %v897, %v988
        %v1053 = vsub.f32 %v902, %v995
        %v1054 = vsub.f32 %v905, %v1002
        %v1055 = vsub.f32 %v910, %v1009
        %v1056 = vsub.f32 %v913, %v1016
        %v1057 = vsub.f32 %v918, %v1023
        %v1058 = vsub.f32 %v921, %v1030
        %v1059 = vsub.f32 %v926, %v1037
        %v1060 = vsub.f32 %v929, %v1044
        %v1061 = vmul.f32 %v1045, 1.442695
        %v1062 = vpow.pop %v1061
        %v1063 = vmul.f32 %v1046, 1.442695
        %v1064 = vpow.pop %v1063
        %v1065 = vmul.f32 %v1047, 1.442695
        %v1066 = vpow.pop %v1065
        %v1067 = vmul.f32 %v1048, 1.442695
        %v1068 = vpow.pop %v1067
        %v1069 = vmul.f32 %v1049, 1.442695
        %v1070 = vpow.pop %v1069
        %v1071 = vmul.f32 %v1050, 1.442695
        %v1072 = vpow.pop %v1071
        %v1073 = vmul.f32 %v1051, 1.442695
        %v1074 = vpow.pop %v1073
        %v1075 = vmul.f32 %v1052, 1.442695
        %v1076 = vpow.pop %v1075
        %v1077 = vmul.f32 %v1053, 1.442695
        %v1078 = vpow.pop %v1077
        %v1079 = vmul.f32 %v1054, 1.442695
        %v1080 = vpow.pop %v1079
        %v1081 = vmul.f32 %v1055, 1.442695
        %v1082 = vpow.pop %v1081
        %v1083 = vmul.f32 %v1056, 1.442695
        %v1084 = vpow.pop %v1083
        %v1085 = vmul.f32 %v1057, 1.442695
        %v1086 = vpow.pop %v1085
        %v1087 = vmul.f32 %v1058, 1.442695
        %v1088 = vpow.pop %v1087
        %v1089 = vmul.f32 %v1059, 1.442695
        %v1090 = vpow.pop %v1089
        %v1091 = vmul.f32 %v1060, 1.442695
        %v1092 = vpow.pop %v1091
        %v1093 = vsel %vm932, %v1062, 0.0
        %v1094 = vrot.slane %v1093, 4
        %v1095 = vadd.f32 %v1093, %v1094
        %v1096 = vrot.slane %v1095, 2
        %v1097 = vadd.f32 %v1095, %v1096
        %v1098 = vrot.slane %v1097, 1
        %v1099 = vadd.f32 %v1097, %v1098
        %v1100 = vsel %vm932, %v1064, 0.0
        %v1101 = vrot.slane %v1100, 4
        %v1102 = vadd.f32 %v1100, %v1101
        %v1103 = vrot.slane %v1102, 2
        %v1104 = vadd.f32 %v1102, %v1103
        %v1105 = vrot.slane %v1104, 1
        %v1106 = vadd.f32 %v1104, %v1105
        %v1107 = vsel %vm932, %v1066, 0.0
        %v1108 = vrot.slane %v1107, 4
        %v1109 = vadd.f32 %v1107, %v1108
        %v1110 = vrot.slane %v1109, 2
        %v1111 = vadd.f32 %v1109, %v1110
        %v1112 = vrot.slane %v1111, 1
        %v1113 = vadd.f32 %v1111, %v1112
        %v1114 = vsel %vm932, %v1068, 0.0
        %v1115 = vrot.slane %v1114, 4
        %v1116 = vadd.f32 %v1114, %v1115
        %v1117 = vrot.slane %v1116, 2
        %v1118 = vadd.f32 %v1116, %v1117
        %v1119 = vrot.slane %v1118, 1
        %v1120 = vadd.f32 %v1118, %v1119
        %v1121 = vsel %vm932, %v1070, 0.0
        %v1122 = vrot.slane %v1121, 4
        %v1123 = vadd.f32 %v1121, %v1122
        %v1124 = vrot.slane %v1123, 2
        %v1125 = vadd.f32 %v1123, %v1124
        %v1126 = vrot.slane %v1125, 1
        %v1127 = vadd.f32 %v1125, %v1126
        %v1128 = vsel %vm932, %v1072, 0.0
        %v1129 = vrot.slane %v1128, 4
        %v1130 = vadd.f32 %v1128, %v1129
        %v1131 = vrot.slane %v1130, 2
        %v1132 = vadd.f32 %v1130, %v1131
        %v1133 = vrot.slane %v1132, 1
        %v1134 = vadd.f32 %v1132, %v1133
        %v1135 = vsel %vm932, %v1074, 0.0
        %v1136 = vrot.slane %v1135, 4
        %v1137 = vadd.f32 %v1135, %v1136
        %v1138 = vrot.slane %v1137, 2
        %v1139 = vadd.f32 %v1137, %v1138
        %v1140 = vrot.slane %v1139, 1
        %v1141 = vadd.f32 %v1139, %v1140
        %v1142 = vsel %vm932, %v1076, 0.0
        %v1143 = vrot.slane %v1142, 4
        %v1144 = vadd.f32 %v1142, %v1143
        %v1145 = vrot.slane %v1144, 2
        %v1146 = vadd.f32 %v1144, %v1145
        %v1147 = vrot.slane %v1146, 1
        %v1148 = vadd.f32 %v1146, %v1147
        %v1149 = vsel %vm932, %v1078, 0.0
        %v1150 = vrot.slane %v1149, 4
        %v1151 = vadd.f32 %v1149, %v1150
        %v1152 = vrot.slane %v1151, 2
        %v1153 = vadd.f32 %v1151, %v1152
        %v1154 = vrot.slane %v1153, 1
        %v1155 = vadd.f32 %v1153, %v1154
        %v1156 = vsel %vm932, %v1080, 0.0
        %v1157 = vrot.slane %v1156, 4
        %v1158 = vadd.f32 %v1156, %v1157
        %v1159 = vrot.slane %v1158, 2
        %v1160 = vadd.f32 %v1158, %v1159
        %v1161 = vrot.slane %v1160, 1
        %v1162 = vadd.f32 %v1160, %v1161
        %v1163 = vsel %vm932, %v1082, 0.0
        %v1164 = vrot.slane %v1163, 4
        %v1165 = vadd.f32 %v1163, %v1164
        %v1166 = vrot.slane %v1165, 2
        %v1167 = vadd.f32 %v1165, %v1166
        %v1168 = vrot.slane %v1167, 1
        %v1169 = vadd.f32 %v1167, %v1168
        %v1170 = vsel %vm932, %v1084, 0.0
        %v1171 = vrot.slane %v1170, 4
        %v1172 = vadd.f32 %v1170, %v1171
        %v1173 = vrot.slane %v1172, 2
        %v1174 = vadd.f32 %v1172, %v1173
        %v1175 = vrot.slane %v1174, 1
        %v1176 = vadd.f32 %v1174, %v1175
        %v1177 = vsel %vm932, %v1086, 0.0
        %v1178 = vrot.slane %v1177, 4
        %v1179 = vadd.f32 %v1177, %v1178
        %v1180 = vrot.slane %v1179, 2
        %v1181 = vadd.f32 %v1179, %v1180
        %v1182 = vrot.slane %v1181, 1
        %v1183 = vadd.f32 %v1181, %v1182
        %v1184 = vsel %vm932, %v1088, 0.0
        %v1185 = vrot.slane %v1184, 4
        %v1186 = vadd.f32 %v1184, %v1185
        %v1187 = vrot.slane %v1186, 2
        %v1188 = vadd.f32 %v1186, %v1187
        %v1189 = vrot.slane %v1188, 1
        %v1190 = vadd.f32 %v1188, %v1189
        %v1191 = vsel %vm932, %v1090, 0.0
        %v1192 = vrot.slane %v1191, 4
        %v1193 = vadd.f32 %v1191, %v1192
        %v1194 = vrot.slane %v1193, 2
        %v1195 = vadd.f32 %v1193, %v1194
        %v1196 = vrot.slane %v1195, 1
        %v1197 = vadd.f32 %v1195, %v1196
        %v1198 = vsel %vm932, %v1092, 0.0
        %v1199 = vrot.slane %v1198, 4
        %v1200 = vadd.f32 %v1198, %v1199
        %v1201 = vrot.slane %v1200, 2
        %v1202 = vadd.f32 %v1200, %v1201
        %v1203 = vrot.slane %v1202, 1
        %v1204 = vadd.f32 %v1202, %v1203
        %v1205 = vrcp.pop %v1099
        %v1206 = vrcp.pop %v1106
        %v1207 = vrcp.pop %v1113
        %v1208 = vrcp.pop %v1120
        %v1209 = vrcp.pop %v1127
        %v1210 = vrcp.pop %v1134
        %v1211 = vrcp.pop %v1141
        %v1212 = vrcp.pop %v1148
        %v1213 = vrcp.pop %v1155
        %v1214 = vrcp.pop %v1162
        %v1215 = vrcp.pop %v1169
        %v1216 = vrcp.pop %v1176
        %v1217 = vrcp.pop %v1183
        %v1218 = vrcp.pop %v1190
        %v1219 = vrcp.pop %v1197
        %v1220 = vrcp.pop %v1204
        %v1221 = vmul.f32 %v1062, %v1205
        %v1222 = vmul.f32 %v1064, %v1206
        %v1223 = vmul.f32 %v1066, %v1207
        %v1224 = vmul.f32 %v1068, %v1208
        %v1225 = vmul.f32 %v1070, %v1209
        %v1226 = vmul.f32 %v1072, %v1210
        %v1227 = vmul.f32 %v1074, %v1211
        %v1228 = vmul.f32 %v1076, %v1212
        %v1229 = vmul.f32 %v1078, %v1213
        %v1230 = vmul.f32 %v1080, %v1214
        %v1231 = vmul.f32 %v1082, %v1215
        %v1232 = vmul.f32 %v1084, %v1216
        %v1233 = vmul.f32 %v1086, %v1217
        %v1234 = vmul.f32 %v1088, %v1218
        %v1235 = vmul.f32 %v1090, %v1219
        %v1236 = vmul.f32 %v1092, %v1220
        %v1237 = vpack.c.bf16 %v1222, %v1221
        %v1238 = vpack.c.bf16 %v1224, %v1223
        %v1239 = vpack.c.bf16 %v1226, %v1225
        %v1240 = vpack.c.bf16 %v1228, %v1227
        %v1241 = vpack.c.bf16 %v1230, %v1229
        %v1242 = vpack.c.bf16 %v1232, %v1231
        %v1243 = vpack.c.bf16 %v1234, %v1233
        %v1244 = vpack.c.bf16 %v1236, %v1235
        %v1245 = vld [vmem:[%s7] sm:$0xf]
        %v1247 = vsel %vm932, %v1237, 0
        %v1250 = vsel %vm932, %v1238, 0
        %v1253 = vsel %vm932, %v1239, 0
        %v1256 = vsel %vm932, %v1240, 0
        %v1259 = vsel %vm932, %v1241, 0
        %v1262 = vsel %vm932, %v1242, 0
        %v1265 = vsel %vm932, %v1243, 0
        %v1268 = vsel %vm932, %v1244, 0
        %vm1270 = vcmask 1043456
        %v1272 = vsel %vm1270, %v1245, 0
        %1274 = vmatprep.subr.bf16.mxu0 0
        %1275 = vmatpush1.bf16.msra.mxu0 %v1272
        %1276 = vmatprep.subr.bf16.mxu0 0
        %1277 = vmatpush1.bf16.msra.mxu0 0
        %1278 = vmatprep.subr.bf16.mxu0 0
        %1279 = vmatpush1.bf16.msra.mxu0 0
        %1280 = vmatprep.subr.bf16.mxu0 0
        %1281 = vmatpush1.bf16.msra.mxu0 0
        %1282 = vmatprep.subr.bf16.mxu0 0
        %1283 = vmatpush1.bf16.msra.mxu0 0
        %1284 = vmatprep.subr.bf16.mxu0 0
        %1285 = vmatpush1.bf16.msra.mxu0 0
        %1286 = vmatprep.subr.bf16.mxu0 0
        %1287 = vmatpush1.bf16.msra.mxu0 0
        %1288 = vmatprep.subr.bf16.mxu0 0
        %1289 = vmatpush1.bf16.msra.mxu0 0
        %1290 = vmatprep.subr.bf16.mxu0 0
        %1291 = vmatpush1.bf16.msra.mxu0 0
        %1292 = vmatprep.subr.bf16.mxu0 0
        %1293 = vmatpush1.bf16.msra.mxu0 0
        %1294 = vmatprep.subr.bf16.mxu0 0
        %1295 = vmatpush1.bf16.msra.mxu0 0
        %1296 = vmatprep.subr.bf16.mxu0 0
        %1297 = vmatpush1.bf16.msra.mxu0 0
        %1298 = vmatprep.subr.bf16.mxu0 0
        %1299 = vmatpush1.bf16.msra.mxu0 0
        %1300 = vmatprep.subr.bf16.mxu0 0
        %1301 = vmatpush1.bf16.msra.mxu0 0
        %1302 = vmatprep.subr.bf16.mxu0 0
        %1303 = vmatpush1.bf16.msra.mxu0 0
        %1304 = vmatprep.subr.bf16.mxu0 0
        %1305 = vmatpush1.bf16.msra.mxu0 0
        %1306 = vmatprep.mubr.bf16.mxu0 0
        %1307 = vmatmul.mubr.bf16.gmra.mrb[0].mxu0 %v1247
        %v1308 = vpop.f32.mrb[0].mxu0
        %v1309 = vadd.f32 0.0, %v1308
        %v1310 = vpop.f32.mrb[0].mxu0
        %v1311 = vpop.f32.mrb[0].mxu0
        %v1312 = vadd.f32 0.0, %v1311
        %v1313 = vpop.f32.mrb[0].mxu0
        %1314 = vmatprep.mubr.bf16.mxu0 0
        %1315 = vmatmul.mubr.bf16.gmra.mrb[0].mxu0 %v1250
        %v1316 = vpop.f32.mrb[0].mxu0
        %v1317 = vadd.f32 0.0, %v1316
        %v1318 = vpop.f32.mrb[0].mxu0
        %v1319 = vpop.f32.mrb[0].mxu0
        %v1320 = vadd.f32 0.0, %v1319
        %v1321 = vpop.f32.mrb[0].mxu0
        %1322 = vmatprep.mubr.bf16.mxu0 0
        %1323 = vmatmul.mubr.bf16.gmra.mrb[0].mxu0 %v1253
        %v1324 = vpop.f32.mrb[0].mxu0
        %v1325 = vadd.f32 0.0, %v1324
        %v1326 = vpop.f32.mrb[0].mxu0
        %v1327 = vpop.f32.mrb[0].mxu0
        %v1328 = vadd.f32 0.0, %v1327
        %v1329 = vpop.f32.mrb[0].mxu0
        %1330 = vmatprep.mubr.bf16.mxu0 0
        %1331 = vmatmul.mubr.bf16.gmra.mrb[0].mxu0 %v1256
        %v1332 = vpop.f32.mrb[0].mxu0
        %v1333 = vadd.f32 0.0, %v1332
        %v1334 = vpop.f32.mrb[0].mxu0
        %v1335 = vpop.f32.mrb[0].mxu0
        %v1336 = vadd.f32 0.0, %v1335
        %v1337 = vpop.f32.mrb[0].mxu0
        %1338 = vmatprep.mubr.bf16.mxu0 0
        %1339 = vmatmul.mubr.bf16.gmra.mrb[0].mxu0 %v1259
        %v1340 = vpop.f32.mrb[0].mxu0
        %v1341 = vadd.f32 0.0, %v1340
        %v1342 = vpop.f32.mrb[0].mxu0
        %v1343 = vpop.f32.mrb[0].mxu0
        %v1344 = vadd.f32 0.0, %v1343
        %v1345 = vpop.f32.mrb[0].mxu0
        %1346 = vmatprep.mubr.bf16.mxu0 0
        %1347 = vmatmul.mubr.bf16.gmra.mrb[0].mxu0 %v1262
        %v1348 = vpop.f32.mrb[0].mxu0
        %v1349 = vadd.f32 0.0, %v1348
        %v1350 = vpop.f32.mrb[0].mxu0
        %v1351 = vpop.f32.mrb[0].mxu0
        %v1352 = vadd.f32 0.0, %v1351
        %v1353 = vpop.f32.mrb[0].mxu0
        %1354 = vmatprep.mubr.bf16.mxu0 0
        %1355 = vmatmul.mubr.bf16.gmra.mrb[0].mxu0 %v1265
        %v1356 = vpop.f32.mrb[0].mxu0
        %v1357 = vadd.f32 0.0, %v1356
        %v1358 = vpop.f32.mrb[0].mxu0
        %v1359 = vpop.f32.mrb[0].mxu0
        %v1360 = vadd.f32 0.0, %v1359
        %v1361 = vpop.f32.mrb[0].mxu0
        %1362 = vmatprep.mubr.bf16.mxu0 0
        %1363 = vmatmul.mubr.bf16.gmra.mrb[0].mxu0 %v1268
        %v1364 = vpop.f32.mrb[0].mxu0
        %v1365 = vadd.f32 0.0, %v1364
        %v1366 = vpop.f32.mrb[0].mxu0
        %v1367 = vpop.f32.mrb[0].mxu0
        %v1368 = vadd.f32 0.0, %v1367
        %v1369 = vpop.f32.mrb[0].mxu0
        %1370 = vdwg.mxu0
        %1387 = vrot.lane.b32.xlu0 %v464, 96
        %v1388 = vpop.permute.xlu0 %1387
        %1389 = vrot.lane.b32.xlu0 %v467, 96
        %v1390 = vpop.permute.xlu0 %1389
        %1391 = vrot.lane.b32.xlu0 %v472, 96
        %v1392 = vpop.permute.xlu0 %1391
        %1393 = vrot.lane.b32.xlu0 %v475, 96
        %v1394 = vpop.permute.xlu0 %1393
        %1395 = vrot.lane.b32.xlu0 %v480, 96
        %v1396 = vpop.permute.xlu0 %1395
        %1397 = vrot.lane.b32.xlu0 %v483, 96
        %v1398 = vpop.permute.xlu0 %1397
        %1399 = vrot.lane.b32.xlu0 %v488, 96
        %v1400 = vpop.permute.xlu0 %1399
        %1401 = vrot.lane.b32.xlu0 %v491, 96
        %v1402 = vpop.permute.xlu0 %1401
        %1403 = vrot.lane.b32.xlu0 %v496, 96
        %v1404 = vpop.permute.xlu0 %1403
        %1405 = vrot.lane.b32.xlu0 %v499, 96
        %v1406 = vpop.permute.xlu0 %1405
        %1407 = vrot.lane.b32.xlu0 %v504, 96
        %v1408 = vpop.permute.xlu0 %1407
        %1409 = vrot.lane.b32.xlu0 %v507, 96
        %v1410 = vpop.permute.xlu0 %1409
        %1411 = vrot.lane.b32.xlu0 %v512, 96
        %v1412 = vpop.permute.xlu0 %1411
        %1413 = vrot.lane.b32.xlu0 %v515, 96
        %v1414 = vpop.permute.xlu0 %1413
        %1415 = vrot.lane.b32.xlu0 %v520, 96
        %v1416 = vpop.permute.xlu0 %1415
        %1417 = vrot.lane.b32.xlu0 %v523, 96
        %v1418 = vpop.permute.xlu0 %1417
        %v1435 = vmul.f32 %v1309, %v1388
        %v1436 = vmul.f32 %v1312, %v1390
        %v1437 = vmul.f32 %v1317, %v1392
        %v1438 = vmul.f32 %v1320, %v1394
        %v1439 = vmul.f32 %v1325, %v1396
        %v1440 = vmul.f32 %v1328, %v1398
        %v1441 = vmul.f32 %v1333, %v1400
        %v1442 = vmul.f32 %v1336, %v1402
        %v1443 = vmul.f32 %v1341, %v1404
        %v1444 = vmul.f32 %v1344, %v1406
        %v1445 = vmul.f32 %v1349, %v1408
        %v1446 = vmul.f32 %v1352, %v1410
        %v1447 = vmul.f32 %v1357, %v1412
        %v1448 = vmul.f32 %v1360, %v1414
        %v1449 = vmul.f32 %v1365, %v1416
        %v1450 = vmul.f32 %v1368, %v1418
        %v1451 = vsel %vm404, %v1435, 0.0
        %v1452 = vrot.slane %v1451, 4
        %v1453 = vadd.f32 %v1451, %v1452
        %v1454 = vrot.slane %v1453, 2
        %v1455 = vadd.f32 %v1453, %v1454
        %v1456 = vrot.slane %v1455, 1
        %v1457 = vadd.f32 %v1455, %v1456
        %v1458 = vsel %vm404, %v1436, 0.0
        %v1459 = vrot.slane %v1458, 4
        %v1460 = vadd.f32 %v1458, %v1459
        %v1461 = vrot.slane %v1460, 2
        %v1462 = vadd.f32 %v1460, %v1461
        %v1463 = vrot.slane %v1462, 1
        %v1464 = vadd.f32 %v1462, %v1463
        %v1465 = vsel %vm404, %v1437, 0.0
        %v1466 = vrot.slane %v1465, 4
        %v1467 = vadd.f32 %v1465, %v1466
        %v1468 = vrot.slane %v1467, 2
        %v1469 = vadd.f32 %v1467, %v1468
        %v1470 = vrot.slane %v1469, 1
        %v1471 = vadd.f32 %v1469, %v1470
        %v1472 = vsel %vm404, %v1438, 0.0
        %v1473 = vrot.slane %v1472, 4
        %v1474 = vadd.f32 %v1472, %v1473
        %v1475 = vrot.slane %v1474, 2
        %v1476 = vadd.f32 %v1474, %v1475
        %v1477 = vrot.slane %v1476, 1
        %v1478 = vadd.f32 %v1476, %v1477
        %v1479 = vsel %vm404, %v1439, 0.0
        %v1480 = vrot.slane %v1479, 4
        %v1481 = vadd.f32 %v1479, %v1480
        %v1482 = vrot.slane %v1481, 2
        %v1483 = vadd.f32 %v1481, %v1482
        %v1484 = vrot.slane %v1483, 1
        %v1485 = vadd.f32 %v1483, %v1484
        %v1486 = vsel %vm404, %v1440, 0.0
        %v1487 = vrot.slane %v1486, 4
        %v1488 = vadd.f32 %v1486, %v1487
        %v1489 = vrot.slane %v1488, 2
        %v1490 = vadd.f32 %v1488, %v1489
        %v1491 = vrot.slane %v1490, 1
        %v1492 = vadd.f32 %v1490, %v1491
        %v1493 = vsel %vm404, %v1441, 0.0
        %v1494 = vrot.slane %v1493, 4
        %v1495 = vadd.f32 %v1493, %v1494
        %v1496 = vrot.slane %v1495, 2
        %v1497 = vadd.f32 %v1495, %v1496
        %v1498 = vrot.slane %v1497, 1
        %v1499 = vadd.f32 %v1497, %v1498
        %v1500 = vsel %vm404, %v1442, 0.0
        %v1501 = vrot.slane %v1500, 4
        %v1502 = vadd.f32 %v1500, %v1501
        %v1503 = vrot.slane %v1502, 2
        %v1504 = vadd.f32 %v1502, %v1503
        %v1505 = vrot.slane %v1504, 1
        %v1506 = vadd.f32 %v1504, %v1505
        %v1507 = vsel %vm404, %v1443, 0.0
        %v1508 = vrot.slane %v1507, 4
        %v1509 = vadd.f32 %v1507, %v1508
        %v1510 = vrot.slane %v1509, 2
        %v1511 = vadd.f32 %v1509, %v1510
        %v1512 = vrot.slane %v1511, 1
        %v1513 = vadd.f32 %v1511, %v1512
        %v1514 = vsel %vm404, %v1444, 0.0
        %v1515 = vrot.slane %v1514, 4
        %v1516 = vadd.f32 %v1514, %v1515
        %v1517 = vrot.slane %v1516, 2
        %v1518 = vadd.f32 %v1516, %v1517
        %v1519 = vrot.slane %v1518, 1
        %v1520 = vadd.f32 %v1518, %v1519
        %v1521 = vsel %vm404, %v1445, 0.0
        %v1522 = vrot.slane %v1521, 4
        %v1523 = vadd.f32 %v1521, %v1522
        %v1524 = vrot.slane %v1523, 2
        %v1525 = vadd.f32 %v1523, %v1524
        %v1526 = vrot.slane %v1525, 1
        %v1527 = vadd.f32 %v1525, %v1526
        %v1528 = vsel %vm404, %v1446, 0.0
        %v1529 = vrot.slane %v1528, 4
        %v1530 = vadd.f32 %v1528, %v1529
        %v1531 = vrot.slane %v1530, 2
        %v1532 = vadd.f32 %v1530, %v1531
        %v1533 = vrot.slane %v1532, 1
        %v1534 = vadd.f32 %v1532, %v1533
        %v1535 = vsel %vm404, %v1447, 0.0
        %v1536 = vrot.slane %v1535, 4
        %v1537 = vadd.f32 %v1535, %v1536
        %v1538 = vrot.slane %v1537, 2
        %v1539 = vadd.f32 %v1537, %v1538
        %v1540 = vrot.slane %v1539, 1
        %v1541 = vadd.f32 %v1539, %v1540
        %v1542 = vsel %vm404, %v1448, 0.0
        %v1543 = vrot.slane %v1542, 4
        %v1544 = vadd.f32 %v1542, %v1543
        %v1545 = vrot.slane %v1544, 2
        %v1546 = vadd.f32 %v1544, %v1545
        %v1547 = vrot.slane %v1546, 1
        %v1548 = vadd.f32 %v1546, %v1547
        %v1549 = vsel %vm404, %v1449, 0.0
        %v1550 = vrot.slane %v1549, 4
        %v1551 = vadd.f32 %v1549, %v1550
        %v1552 = vrot.slane %v1551, 2
        %v1553 = vadd.f32 %v1551, %v1552
        %v1554 = vrot.slane %v1553, 1
        %v1555 = vadd.f32 %v1553, %v1554
        %v1556 = vsel %vm404, %v1450, 0.0
        %v1557 = vrot.slane %v1556, 4
        %v1558 = vadd.f32 %v1556, %v1557
        %v1559 = vrot.slane %v1558, 2
        %v1560 = vadd.f32 %v1558, %v1559
        %v1561 = vrot.slane %v1560, 1
        %v1562 = vadd.f32 %v1560, %v1561
        %v1563 = vpack.c.bf16 %v1457, %v1457
        %v1564 = vpack.c.bf16 %v1464, %v1464
        %v1565 = vpack.c.bf16 %v1471, %v1471
        %v1566 = vpack.c.bf16 %v1478, %v1478
        %v1567 = vpack.c.bf16 %v1485, %v1485
        %v1568 = vpack.c.bf16 %v1492, %v1492
        %v1569 = vpack.c.bf16 %v1499, %v1499
        %v1570 = vpack.c.bf16 %v1506, %v1506
        %v1571 = vpack.c.bf16 %v1513, %v1513
        %v1572 = vpack.c.bf16 %v1520, %v1520
        %v1573 = vpack.c.bf16 %v1527, %v1527
        %v1574 = vpack.c.bf16 %v1534, %v1534
        %v1575 = vpack.c.bf16 %v1541, %v1541
        %v1576 = vpack.c.bf16 %v1548, %v1548
        %v1577 = vpack.c.bf16 %v1555, %v1555
        %v1578 = vpack.c.bf16 %v1562, %v1562
        %v1579 = vld [vmem:[%s4] sm:$0xf]
        %v1580 = vld [vmem:[%s4 + $0x4] sm:$0xf]
        %v1581 = vld [vmem:[%s4 + $0x8] sm:$0xf]
        %v1582 = vld [vmem:[%s4 + $0xc] sm:$0xf]
        %v1583 = vld [vmem:[%s5] sm:$0x1]
        %v1585 = vlaneseq
        %v1586 = vshrl.u32 %v1585, 7
        %v1587 = vsub.s32 0, %v1586
        %v1588 = vrot.slane %v1583, %v1587
        %v1606 = vunpack.c.l.b16 %v1563
        %v1607 = vunpack.c.l.b16 %v1564
        %v1608 = vunpack.c.l.b16 %v1565
        %v1609 = vunpack.c.l.b16 %v1566
        %v1610 = vunpack.c.l.b16 %v1567
        %v1611 = vunpack.c.l.b16 %v1568
        %v1612 = vunpack.c.l.b16 %v1569
        %v1613 = vunpack.c.l.b16 %v1570
        %v1614 = vunpack.c.l.b16 %v1571
        %v1615 = vunpack.c.l.b16 %v1572
        %v1616 = vunpack.c.l.b16 %v1573
        %v1617 = vunpack.c.l.b16 %v1574
        %v1618 = vunpack.c.l.b16 %v1575
        %v1619 = vunpack.c.l.b16 %v1576
        %v1620 = vunpack.c.l.b16 %v1577
        %v1621 = vunpack.c.l.b16 %v1578
        %vm1622 = vcmask 1041409
        %v1623 = vsel %vm1622, %v1607, %v1606
        %vm1624 = vcmask 1042434
        %v1625 = vsel %vm1624, %v1608, %v1623
        %vm1626 = vcmask 1043459
        %v1627 = vsel %vm1626, %v1609, %v1625
        %vm1628 = vcmask 1044484
        %v1629 = vsel %vm1628, %v1610, %v1627
        %vm1630 = vcmask 1045509
        %v1631 = vsel %vm1630, %v1611, %v1629
        %vm1632 = vcmask 1046534
        %v1633 = vsel %vm1632, %v1612, %v1631
        %vm1634 = vcmask 1047559
        %v1635 = vsel %vm1634, %v1613, %v1633
        %v1636 = vsel %vm1622, %v1615, %v1614
        %v1637 = vsel %vm1624, %v1616, %v1636
        %v1638 = vsel %vm1626, %v1617, %v1637
        %v1639 = vsel %vm1628, %v1618, %v1638
        %v1640 = vsel %vm1630, %v1619, %v1639
        %v1641 = vsel %vm1632, %v1620, %v1640
        %v1642 = vsel %vm1634, %v1621, %v1641
        %v1643 = vpack.c.b16 %v1642, %v1635
        %v1648 = vunpack.c.l.b16 %v1579
        %v1649 = vunpack.c.l.b16 %v1580
        %v1650 = vunpack.c.l.b16 %v1581
        %v1651 = vunpack.c.l.b16 %v1582
        %v1652 = vpack.c.b16 %v1649, %v1648
        %v1653 = vpack.c.b16 %v1651, %v1650
        %v1657 = vsel %vm404, %v1643, 0
        %1659 = vmatprep.subr.bf16.mxu0 0
        %1660 = vmatpush1.bf16.msra.mxu0 %v1652
        %1661 = vmatprep.subr.bf16.mxu0 0
        %1662 = vmatpush1.bf16.msra.mxu0 %v1653
        %1663 = vmatprep.subr.bf16.mxu0 0
        %1664 = vmatpush1.bf16.msra.mxu0 0
        %1665 = vmatprep.subr.bf16.mxu0 0
        %1666 = vmatpush1.bf16.msra.mxu0 0
        %1667 = vmatprep.subr.bf16.mxu0 0
        %1668 = vmatpush1.bf16.msra.mxu0 0
        %1669 = vmatprep.subr.bf16.mxu0 0
        %1670 = vmatpush1.bf16.msra.mxu0 0
        %1671 = vmatprep.subr.bf16.mxu0 0
        %1672 = vmatpush1.bf16.msra.mxu0 0
        %1673 = vmatprep.subr.bf16.mxu0 0
        %1674 = vmatpush1.bf16.msra.mxu0 0
        %1675 = vmatprep.subr.bf16.mxu0 0
        %1676 = vmatpush1.bf16.msra.mxu0 0
        %1677 = vmatprep.subr.bf16.mxu0 0
        %1678 = vmatpush1.bf16.msra.mxu0 0
        %1679 = vmatprep.subr.bf16.mxu0 0
        %1680 = vmatpush1.bf16.msra.mxu0 0
        %1681 = vmatprep.subr.bf16.mxu0 0
        %1682 = vmatpush1.bf16.msra.mxu0 0
        %1683 = vmatprep.subr.bf16.mxu0 0
        %1684 = vmatpush1.bf16.msra.mxu0 0
        %1685 = vmatprep.subr.bf16.mxu0 0
        %1686 = vmatpush1.bf16.msra.mxu0 0
        %1687 = vmatprep.subr.bf16.mxu0 0
        %1688 = vmatpush1.bf16.msra.mxu0 0
        %1689 = vmatprep.subr.bf16.mxu0 0
        %1690 = vmatpush1.bf16.msra.mxu0 0
        %1691 = vmatprep.mubr.bf16.mxu0 0
        %1692 = vmatmul.mubr.bf16.gmra.mrb[0].mxu0 %v1657
        %v1693 = vpop.f32.mrb[0].mxu0
        %v1694 = vadd.f32 %v1588, %v1693
        %v1695 = vpop.f32.mrb[0].mxu0
        %v1696 = vpop.f32.mrb[0].mxu0
        %v1697 = vadd.f32 %v1588, %v1696
        %v1698 = vpop.f32.mrb[0].mxu0
        %1699 = vdwg.mxu0
        %1700 = vst.msk [vmem:[%s315] sm:$0xff] %vm404, %v1694
        %1701 = vst.msk [vmem:[%s315 + $0x8] sm:$0xff] %vm404, %v1697
        %s1702 = sand.u32 %s208, 1
        %s1703 = scalar_lea.sflag [#allocation3], %s1702
        %s1704 = sand.u32 %s208, 1
        %s1705 = smul.addr %s1704, 16
        %s1706 = scalar_lea.vmem [#allocation2], %s1705
        // Predicated region
        $region53: #{tpu_custom_call.1} parent=51 // pred_check
          %p1707 = pneg %p218
        $region54: #{tpu_custom_call.1} parent=51 // pred_check_branch
          %1709 = sbr.rel (%p1707) target = $region56
        $region55: #{tpu_custom_call.1} parent=51 // pred_region
          %s1710 = smul.u32 2, %s22
          %s1712 = ssub.s32 256, 256
          %1713 = vsyncadd %s1703, %s1712
          %s1714 = smul.addr %s1710, 128
          %s1715 = scalar_lea.hbm %s8, %s1714
          %s1716 = sshll.u32 %s1706, 4
          %s1717 = int_to_ptr.vmem [resolvable:$true] %s1716
          %1722 = dma.vmem_to_hbm [thread:$0]  %s1717, 256, %s1715, %s1703, 128, 128, 8
        $region56: #{tpu_custom_call.1} parent=51 // pred_fallthru
          _
      $region52: #{tpu_custom_call.1} parent=5 // pred_fallthru
        _
      %p1723 = scmp.le.s32.totalorder 2, %s17
      // Predicated region
      $region57: #{tpu_custom_call.1} parent=5 // pred_check
        %p1724 = pneg %p1723
      $region58: #{tpu_custom_call.1} parent=5 // pred_check_branch
        %1726 = sbr.rel (%p1724) target = $region60
      $region59: #{tpu_custom_call.1} parent=5 // pred_region
        %s1727 = ssub.s32 %s17, 2
        // Predicated region
        $region61: #{tpu_custom_call.1} parent=59 // pred_check
          %p1728 = pneg %p224
        $region62: #{tpu_custom_call.1} parent=59 // pred_check_branch
          %1730 = sbr.rel (%p1728) target = $region64
        $region63: #{tpu_custom_call.1} parent=59 // pred_region
          %s1731 = sand.u32 %s209, 1
          %s1732 = scalar_lea.sflag [#allocation3], %s1731
          %s1733 = sand.u32 %s209, 1
          %s1734 = smul.addr %s1733, 16
          %s1735 = scalar_lea.vmem [#allocation2], %s1734
          %1736 = dma.done %s1732, 256
        $region64: #{tpu_custom_call.1} parent=59 // pred_fallthru
          _
      $region60: #{tpu_custom_call.1} parent=5 // pred_fallthru
        _
    $region6: #{tpu_custom_call.1} parent=1 // loop_footer
      %s21 = sadd.s32 1, %s17
    $region7: #{tpu_custom_call.1} parent=1 // loop_footer_branch
      %16 = sbr.rel target = $region3
    $region8: #{tpu_custom_call.1} parent=1 // loop_exit
      _
    %1737 = vsyncpa [#allocation3], 1
    %s1738 = scalar_lea.sflag [#allocation3], 1
    %1739 = vsyncpa %s1738, 1

</llo_original>
